<compile_context>
chip_gen: v6e
topology: v6e:2x2x1
jax: 0.10.0
libtpu: 0.0.40
codegen_flags: <defaults>
</compile_context>

<pallas_src>
import functools
import math

import jax
import jax.numpy as jnp
from jax.experimental import pallas as pl
from jax.experimental.pallas import tpu as pltpu


# =============================================================================
# Fused kernel: expand -> depthwise -> project -> PRM gate (-> +residual).
# Processes `nb` images per grid step; everything stays channel-major (C, H*W).
#   x_ref   : (nb, Cin, H*W)   f32   NCHW-flat input block
#   w1t_ref : (Mid, Cin)       bf16  1x1 expand, BN scale folded, pre-transposed
#   b1_ref  : (Mid, 1)         f32
#   wd_ref  : (Mid, k*k)       f32   depthwise taps, BN scale folded
#   b2_ref  : (Mid, 1)         f32
#   w3t_ref : (Cout, Mid)      bf16  1x1 project, BN scale folded, pre-transposed
#   b3_ref  : (Cout, 1)        f32
#   gp_ref  : (G, 4)           f32   per-group PRM params [zero, one, weight, bias]
#   sp_ref  : (1, 4)  SMEM     f32   [theta_row, theta_col, 1/norm, 1/(2*sigma^2)]
#   o_ref   : (nb, Cout, Ho*Wo) f32  NCHW-flat output block (lane-dense store)
# =============================================================================
def _fused_block_kernel(x_ref, w1t_ref, b1_ref, wd_ref, b2_ref, w3t_ref, b3_ref,
                        gp_ref, sp_ref, o_ref, *,
                        h, w, k, stride, ho, wo, groups, apply_residual, nb):
    f32 = jnp.float32
    pad = k // 2
    hw = h * w
    hwo = ho * wo
    mid = w1t_ref.shape[0]
    cout = w3t_ref.shape[0]
    cg = cout // groups
    w_f = float(w)
    wo_f = float(wo)

    # ---- hoisted weights / constants (shared by all nb images) -------------
    w1t = w1t_ref[...]                        # (Mid, Cin)  bf16
    w3t = w3t_ref[...]                        # (Cout, Mid) bf16
    b1 = b1_ref[...]                          # (Mid, 1)
    b2 = b2_ref[...]
    b3 = b3_ref[...]
    wd = wd_ref[...]                          # (Mid, k*k)  loaded once

    # dense-grid row/col of every flat position (float math keeps VPU simple)
    p_iota = jax.lax.broadcasted_iota(jnp.int32, (1, hw), 1).astype(f32)
    p_row = jnp.floor(p_iota / w_f)
    p_col = p_iota - p_row * w_f

    if stride > 1:
        # dense -> strided subsample as a 0/1 selection matmul (no gathers)
        dp = jax.lax.broadcasted_iota(jnp.int32, (hw, hwo), 0).astype(f32)
        op = jax.lax.broadcasted_iota(jnp.int32, (hw, hwo), 1).astype(f32)
        d_row = jnp.floor(dp / w_f)
        d_col = dp - d_row * w_f
        o_row = jnp.floor(op / wo_f)
        o_col = op - o_row * wo_f
        sel = ((d_row == o_row * stride) & (d_col == o_col * stride)).astype(f32)

    # group <-> channel 0/1 selection matrices for the PRM epilogue
    gi = jax.lax.broadcasted_iota(jnp.int32, (groups, cout), 0).astype(f32)
    ci = jax.lax.broadcasted_iota(jnp.int32, (groups, cout), 1).astype(f32)
    gmat = (jnp.floor(ci / float(cg)) == gi).astype(f32)        # (G, Cout)
    gi2 = jax.lax.broadcasted_iota(jnp.int32, (cout, groups), 1).astype(f32)
    ci2 = jax.lax.broadcasted_iota(jnp.int32, (cout, groups), 0).astype(f32)
    gmat_t = (jnp.floor(ci2 / float(cg)) == gi2).astype(f32)    # (Cout, G)

    # PRM scalars / per-group params
    theta_r = sp_ref[0, 0]
    theta_c = sp_ref[0, 1]
    inv_norm = sp_ref[0, 2]
    inv_two_var = sp_ref[0, 3]
    zero_p = gp_ref[:, 0:1]                   # (G, 1)
    one_p = gp_ref[:, 1:2]
    weight_p = gp_ref[:, 2:3]
    bias_p = gp_ref[:, 3:4]

    q_iota = jax.lax.broadcasted_iota(jnp.int32, (groups, hwo), 1)  # (G, HWo)
    pos_f = q_iota.astype(f32)
    pos_row = jnp.floor(pos_f / wo_f)
    pos_col = pos_f - pos_row * wo_f

    for n in range(nb):                       # static unroll over images
        x_img = x_ref[n]                      # (Cin, HW) f32

        # ---- 1x1 expand + folded BN + ReLU (MXU, bf16 in, f32 acc) ---------
        y1 = jnp.dot(w1t, x_img.astype(jnp.bfloat16),
                     preferred_element_type=f32)            # (Mid, HW)
        y1 = jnp.maximum(y1 + b1, 0.0)

        # ---- KxK depthwise: shifted masked FMAs on the dense grid (VPU/XLU)
        acc = jnp.zeros((mid, hw), f32)
        for kh in range(k):
            for kw in range(k):
                dh, dw = kh - pad, kw - pad
                t = kh * k + kw
                shift = (-(dh * w + dw)) % hw
                valid = ((p_row >= -dh) & (p_row <= (h - 1) - dh) &
                         (p_col >= -dw) & (p_col <= (w - 1) - dw)).astype(f32)
                src = y1 if shift == 0 else pltpu.roll(y1, shift, 1)
                acc = acc + src * valid * wd[:, t:t + 1]
        y2 = jnp.maximum(acc + b2, 0.0)                      # (Mid, HW)

        if stride > 1:
            y2 = jnp.dot(y2, sel, preferred_element_type=f32)  # (Mid, HWo)

        # ---- 1x1 project + folded BN (MXU) ----------------------------------
        y3 = jnp.dot(w3t, y2.astype(jnp.bfloat16),
                     preferred_element_type=f32) + b3        # (Cout, HWo)

        # ---- PRM epilogue (dot-product mode), fully in VMEM ------------------
        # per-group channel sum -> spatial argmax (first max, like max_pool)
        sumvalue = jnp.dot(gmat, y3, preferred_element_type=f32)     # (G, HWo)
        maxval = jnp.max(sumvalue, axis=1, keepdims=True)
        idx = jnp.min(jnp.where(sumvalue == maxval, q_iota, hwo),
                      axis=1, keepdims=True)                          # (G, 1)
        onehot = (q_iota == idx).astype(f32)                          # (G, HWo)

        # query value per channel (value at its group's argmax position)
        onehot_c = jnp.dot(gmat_t, onehot, preferred_element_type=f32)  # (C, HWo)
        qv = jnp.sum(y3 * onehot_c, axis=1, keepdims=True)              # (C, 1)
        gap = jnp.mean(y3, axis=1, keepdims=True)                       # (C, 1)

        # dot-product similarities, reduced within each group
        sim_max = jnp.dot(gmat, qv * y3, preferred_element_type=f32)    # (G, HWo)
        sim_gap = jnp.dot(gmat, gap * y3, preferred_element_type=f32)   # (G, HWo)

        # spatial prior: Normal(0, sigma).pdf(|pos - qpos| * theta), mean(row,col)
        idx_f = idx.astype(f32)
        q_row = jnp.floor(idx_f / wo_f)
        q_col = idx_f - q_row * wo_f
        z_row = jnp.abs(pos_row - q_row) * theta_r
        z_col = jnp.abs(pos_col - q_col) * theta_c
        pdf_row = jnp.exp(-(z_row * z_row) * inv_two_var) * inv_norm
        pdf_col = jnp.exp(-(z_col * z_col) * inv_two_var) * inv_norm
        distance = 0.5 * (pdf_row + pdf_col)                            # (G, HWo)

        similarity = sim_max * distance * zero_p + sim_gap * one_p

        # standardize over spatial (unbiased std, eps added to std)
        mean = jnp.mean(similarity, axis=1, keepdims=True)
        context = similarity - mean
        var = jnp.sum(context * context, axis=1, keepdims=True) * (1.0 / (hwo - 1))
        std = jnp.sqrt(var) + 1e-5
        context = context * pl.reciprocal(std, approx=True)
        context = context * weight_p + bias_p
        gate = jax.nn.sigmoid(context)                                  # (G, HWo)

        gate_c = jnp.dot(gmat_t, gate, preferred_element_type=f32)      # (C, HWo)
        out = y3 * gate_c
        if apply_residual:
            out = out + x_img                 # residual from the resident block
        o_ref[n] = out.astype(o_ref.dtype)


def fused_inverted_residual(x_flat, params, gp, sp, *, h, w, k, stride, groups,
                            apply_residual, images_per_step):
    """x_flat: (B, Cin, H*W). Returns (B, Cout, Ho*Wo)."""
    b, cin, hw = x_flat.shape
    mid = params["w1t"].shape[0]
    cout = params["w3t"].shape[0]
    pad = k // 2
    ho = (h + 2 * pad - k) // stride + 1
    wo = (w + 2 * pad - k) // stride + 1
    nb = images_per_step
    assert b % nb == 0

    kernel = functools.partial(
        _fused_block_kernel, h=h, w=w, k=k, stride=stride, ho=ho, wo=wo,
        groups=groups, apply_residual=apply_residual, nb=nb)

    return pl.pallas_call(
        kernel,
        out_shape=jax.ShapeDtypeStruct((b, cout, ho * wo), x_flat.dtype),
        grid=(b // nb,),
        in_specs=[
            pl.BlockSpec((nb, cin, hw), lambda i: (i, 0, 0)),
            pl.BlockSpec((mid, cin), lambda i: (0, 0)),
            pl.BlockSpec((mid, 1), lambda i: (0, 0)),
            pl.BlockSpec((mid, k * k), lambda i: (0, 0)),
            pl.BlockSpec((mid, 1), lambda i: (0, 0)),
            pl.BlockSpec((cout, mid), lambda i: (0, 0)),
            pl.BlockSpec((cout, 1), lambda i: (0, 0)),
            pl.BlockSpec((groups, 4), lambda i: (0, 0)),
            pl.BlockSpec(memory_space=pltpu.MemorySpace.SMEM),
        ],
        out_specs=pl.BlockSpec((nb, cout, ho * wo), lambda i: (i, 0, 0)),
        compiler_params=pltpu.CompilerParams(
            dimension_semantics=("parallel",)),
    )(x_flat, params["w1t"], params["b1"], params["wd"], params["b2"],
      params["w3t"], params["b3"], gp, sp)


# =============================================================================
# Parameter init (deterministic; BN scales folded into conv weights on host;
# 1x1 weights pre-transposed to channel-major and stored in bf16 for the MXU).
# =============================================================================
def _bn_fold(keys, c):
    gamma = jax.random.uniform(keys[0], (c,), jnp.float32, 0.5, 1.5)
    beta = 0.1 * jax.random.normal(keys[1], (c,), jnp.float32)
    r_mean = 0.1 * jax.random.normal(keys[2], (c,), jnp.float32)
    r_var = jax.random.uniform(keys[3], (c,), jnp.float32, 0.5, 1.5)
    scale = gamma * jax.lax.rsqrt(r_var + 1e-5)
    shift = beta - r_mean * scale
    return scale, shift


def init_params(key, in_ch, out_ch, kernel_size, expansion_factor, groups):
    mid_ch = in_ch * expansion_factor
    assert out_ch % groups == 0
    k = jax.random.split(key, 21)
    p = {}
    # 1x1 expand (stored as (Mid, Cin), BN fold along Mid, bf16 for the MXU)
    w1 = 0.1 * jax.random.normal(k[0], (mid_ch, in_ch), jnp.float32)
    s1, b1 = _bn_fold(k[1:5], mid_ch)
    p["w1t"] = (w1 * s1[:, None]).astype(jnp.bfloat16)
    p["b1"] = b1.reshape(mid_ch, 1)
    # depthwise (Mid, k*k), BN fold along Mid, kept f32 (VPU path)
    wd = 0.1 * jax.random.normal(k[5], (mid_ch, kernel_size * kernel_size),
                                 jnp.float32)
    s2, b2 = _bn_fold(k[6:10], mid_ch)
    p["wd"] = wd * s2[:, None]
    p["b2"] = b2.reshape(mid_ch, 1)
    # 1x1 project (stored as (Cout, Mid), BN fold along Cout, bf16)
    w3 = 0.1 * jax.random.normal(k[10], (out_ch, mid_ch), jnp.float32)
    s3, b3 = _bn_fold(k[11:15], out_ch)
    p["w3t"] = (w3 * s3[:, None]).astype(jnp.bfloat16)
    p["b3"] = b3.reshape(out_ch, 1)
    # PRM params (module defaults are zeros/ones; random so the math is
    # exercised non-trivially).
    p["prm_zero"] = 0.5 * jax.random.normal(k[15], (groups,), jnp.float32)
    p["prm_one"] = 1.0 + 0.5 * jax.random.normal(k[16], (groups,), jnp.float32)
    p["prm_weight"] = 0.5 * jax.random.normal(k[17], (groups,), jnp.float32)
    p["prm_bias"] = 1.0 + 0.5 * jax.random.normal(k[18], (groups,), jnp.float32)
    p["prm_theta"] = jax.random.uniform(k[19], (2,), jnp.float32)   # torch.rand(1,2,1,1)
    p["prm_scale"] = jax.random.uniform(k[20], (1,), jnp.float32, 0.5, 1.5)
    return p


# =============================================================================
# Forward: one kernel call; only free (row-major) reshapes in the wrapper.
# =============================================================================
def inverted_residual_forward(params, x_nchw, *, kernel_size, stride, groups,
                              apply_residual, images_per_step=None):
    b, cin, h, w = x_nchw.shape
    pad = kernel_size // 2
    ho = (h + 2 * pad - kernel_size) // stride + 1
    wo = (w + 2 * pad - kernel_size) // stride + 1
    cout = params["w3t"].shape[0]

    if images_per_step is None:
        # Default: fold the batch down to (at most) 2 "parallel" grid steps —
        # enough to feed both v7x TensorCores while cutting per-step pipeline
        # overhead on single-TC v5e/v6e.  Pass images_per_step=b on v5e/v6e to
        # fold the whole batch into one step.
        images_per_step = b // 2 if (b >= 2 and b % 2 == 0) else 1

    # PRM per-group params packed as (G, 4); Gaussian constants precomputed.
    gp = jnp.stack([params["prm_zero"], params["prm_one"],
                    params["prm_weight"], params["prm_bias"]],
                   axis=1).astype(jnp.float32)                       # (G, 4)
    sigma = params["prm_scale"][0]
    inv_norm = 1.0 / (sigma * math.sqrt(2.0 * math.pi))
    inv_two_var = 1.0 / (2.0 * sigma * sigma)
    sp = jnp.stack([params["prm_theta"][0], params["prm_theta"][1],
                    inv_norm, inv_two_var]).reshape(1, 4).astype(jnp.float32)

    y = fused_inverted_residual(
        x_nchw.reshape(b, cin, h * w), params, gp, sp,
        h=h, w=w, k=kernel_size, stride=stride, groups=groups,
        apply_residual=apply_residual, images_per_step=images_per_step)
    return y.reshape(b, cout, ho, wo)


if __name__ == "__main__":
    # Small config consistent with the module: in_ch == out_ch, stride 1 -> residual.
    in_ch, out_ch = 16, 16
    kernel_size, stride, expansion = 3, 1, 2
    groups = 8                                   # PRMLayer default

    key = jax.random.PRNGKey(0)
    kx, kp = jax.random.split(key)
    x = jax.random.normal(kx, (2, in_ch, 16, 16), jnp.float32)   # NCHW like PyTorch
    params = init_params(kp, in_ch, out_ch, kernel_size, expansion, groups)

    apply_residual = (in_ch == out_ch and stride == 1)
    fwd = jax.jit(functools.partial(inverted_residual_forward,
                                    kernel_size=kernel_size, stride=stride,
                                    groups=groups, apply_residual=apply_residual))
    out = fwd(params, x)
    jax.block_until_ready(out)
    assert out.shape == (2, out_ch, 16, 16) and out.dtype == jnp.float32
    assert bool(jnp.all(jnp.isfinite(out)))
    print("KERNEL_OK")
</pallas_src>

<mosaic_0001>
module attributes {stable_mosaic.version = 11 : i64} {
  func.func @_fused_block_kernel(%arg0: i32, %arg1: memref<1x16x256xf32, #tpu.memory_space<vmem>>, %arg2: memref<32x16xbf16, #tpu.memory_space<vmem>>, %arg3: memref<32x1xf32, #tpu.memory_space<vmem>>, %arg4: memref<32x9xf32, #tpu.memory_space<vmem>>, %arg5: memref<32x1xf32, #tpu.memory_space<vmem>>, %arg6: memref<16x32xbf16, #tpu.memory_space<vmem>>, %arg7: memref<16x1xf32, #tpu.memory_space<vmem>>, %arg8: memref<8x4xf32, #tpu.memory_space<vmem>>, %arg9: memref<1x4xf32, #tpu.memory_space<smem>>, %arg10: memref<1x16x256xf32, #tpu.memory_space<vmem>>) attributes {dimension_semantics = [#tpu.dimension_semantics<parallel>], iteration_bounds = array<i64: 2>, scalar_prefetch = 0 : i64, scratch_operands = 0 : i64, tpu.core_type = #tpu.core_type<tc>, window_params = [{transform_indices = @transform_0, window_bounds = array<i64: 1, 16, 256>}, {pipeline_mode = #tpu.pipeline_mode<synchronous>, transform_indices = @transform_1, window_bounds = array<i64: 32, 16>}, {pipeline_mode = #tpu.pipeline_mode<synchronous>, transform_indices = @transform_2, window_bounds = array<i64: 32, 1>}, {pipeline_mode = #tpu.pipeline_mode<synchronous>, transform_indices = @transform_3, window_bounds = array<i64: 32, 9>}, {pipeline_mode = #tpu.pipeline_mode<synchronous>, transform_indices = @transform_4, window_bounds = array<i64: 32, 1>}, {pipeline_mode = #tpu.pipeline_mode<synchronous>, transform_indices = @transform_5, window_bounds = array<i64: 16, 32>}, {pipeline_mode = #tpu.pipeline_mode<synchronous>, transform_indices = @transform_6, window_bounds = array<i64: 16, 1>}, {pipeline_mode = #tpu.pipeline_mode<synchronous>, transform_indices = @transform_7, window_bounds = array<i64: 8, 4>}, {transform_indices = @transform_8, window_bounds = array<i64: 1, 4>}, {transform_indices = @transform_9, window_bounds = array<i64: 1, 16, 256>}]} {
    %c0 = arith.constant 0 : index
    %c0_0 = arith.constant 0 : index
    %0 = vector.load %arg2[%c0, %c0_0] : memref<32x16xbf16, #tpu.memory_space<vmem>>, vector<32x16xbf16>
    %c0_1 = arith.constant 0 : index
    %c0_2 = arith.constant 0 : index
    %1 = vector.load %arg6[%c0_1, %c0_2] : memref<16x32xbf16, #tpu.memory_space<vmem>>, vector<16x32xbf16>
    %c0_3 = arith.constant 0 : index
    %c0_4 = arith.constant 0 : index
    %2 = vector.load %arg3[%c0_3, %c0_4] : memref<32x1xf32, #tpu.memory_space<vmem>>, vector<32x1xf32>
    %c0_5 = arith.constant 0 : index
    %c0_6 = arith.constant 0 : index
    %3 = vector.load %arg5[%c0_5, %c0_6] : memref<32x1xf32, #tpu.memory_space<vmem>>, vector<32x1xf32>
    %c0_7 = arith.constant 0 : index
    %c0_8 = arith.constant 0 : index
    %4 = vector.load %arg7[%c0_7, %c0_8] : memref<16x1xf32, #tpu.memory_space<vmem>>, vector<16x1xf32>
    %c0_9 = arith.constant 0 : index
    %c0_10 = arith.constant 0 : index
    %5 = vector.load %arg4[%c0_9, %c0_10] : memref<32x9xf32, #tpu.memory_space<vmem>>, vector<32x9xf32>
    %6 = tpu.iota {dimensions = array<i32: 1>} : vector<1x256xi32>
    %7 = arith.sitofp %6 : vector<1x256xi32> to vector<1x256xf32>
    %cst = arith.constant 1.600000e+01 : f32
    %8 = vector.broadcast %cst : f32 to vector<1x256xf32>
    %9 = arith.divf %7, %8 : vector<1x256xf32>
    %10 = math.floor %9 : vector<1x256xf32>
    %cst_11 = arith.constant 1.600000e+01 : f32
    %11 = vector.broadcast %cst_11 : f32 to vector<1x256xf32>
    %12 = arith.mulf %10, %11 : vector<1x256xf32>
    %13 = arith.subf %7, %12 : vector<1x256xf32>
    %14 = tpu.iota {dimensions = array<i32: 0>} : vector<8x16xi32>
    %15 = arith.sitofp %14 : vector<8x16xi32> to vector<8x16xf32>
    %16 = tpu.iota {dimensions = array<i32: 1>} : vector<8x16xi32>
    %17 = arith.sitofp %16 : vector<8x16xi32> to vector<8x16xf32>
    %cst_12 = arith.constant 2.000000e+00 : f32
    %18 = vector.broadcast %cst_12 : f32 to vector<8x16xf32>
    %19 = arith.divf %17, %18 : vector<8x16xf32>
    %20 = math.floor %19 : vector<8x16xf32>
    %21 = arith.cmpf oeq, %20, %15 : vector<8x16xf32>
    %22 = arith.extui %21 : vector<8x16xi1> to vector<8x16xi32>
    %23 = arith.sitofp %22 : vector<8x16xi32> to vector<8x16xf32>
    %24 = tpu.iota {dimensions = array<i32: 1>} : vector<16x8xi32>
    %25 = arith.sitofp %24 : vector<16x8xi32> to vector<16x8xf32>
    %26 = tpu.iota {dimensions = array<i32: 0>} : vector<16x8xi32>
    %27 = arith.sitofp %26 : vector<16x8xi32> to vector<16x8xf32>
    %cst_13 = arith.constant 2.000000e+00 : f32
    %28 = vector.broadcast %cst_13 : f32 to vector<16x8xf32>
    %29 = arith.divf %27, %28 : vector<16x8xf32>
    %30 = math.floor %29 : vector<16x8xf32>
    %31 = arith.cmpf oeq, %30, %25 : vector<16x8xf32>
    %32 = arith.extui %31 : vector<16x8xi1> to vector<16x8xi32>
    %33 = arith.sitofp %32 : vector<16x8xi32> to vector<16x8xf32>
    %c0_14 = arith.constant 0 : index
    %c0_15 = arith.constant 0 : index
    %34 = memref.load %arg9[%c0_14, %c0_15] : memref<1x4xf32, #tpu.memory_space<smem>>
    %c0_16 = arith.constant 0 : index
    %c1 = arith.constant 1 : index
    %35 = memref.load %arg9[%c0_16, %c1] : memref<1x4xf32, #tpu.memory_space<smem>>
    %c0_17 = arith.constant 0 : index
    %c2 = arith.constant 2 : index
    %36 = memref.load %arg9[%c0_17, %c2] : memref<1x4xf32, #tpu.memory_space<smem>>
    %c0_18 = arith.constant 0 : index
    %c3 = arith.constant 3 : index
    %37 = memref.load %arg9[%c0_18, %c3] : memref<1x4xf32, #tpu.memory_space<smem>>
    %c0_19 = arith.constant 0 : index
    %c0_20 = arith.constant 0 : index
    %38 = vector.load %arg8[%c0_19, %c0_20] : memref<8x4xf32, #tpu.memory_space<vmem>>, vector<8x1xf32>
    %c0_21 = arith.constant 0 : index
    %c1_22 = arith.constant 1 : index
    %39 = vector.load %arg8[%c0_21, %c1_22] : memref<8x4xf32, #tpu.memory_space<vmem>>, vector<8x1xf32>
    %c0_23 = arith.constant 0 : index
    %c2_24 = arith.constant 2 : index
    %40 = vector.load %arg8[%c0_23, %c2_24] : memref<8x4xf32, #tpu.memory_space<vmem>>, vector<8x1xf32>
    %c0_25 = arith.constant 0 : index
    %c3_26 = arith.constant 3 : index
    %41 = vector.load %arg8[%c0_25, %c3_26] : memref<8x4xf32, #tpu.memory_space<vmem>>, vector<8x1xf32>
    %42 = tpu.iota {dimensions = array<i32: 1>} : vector<8x256xi32>
    %43 = arith.sitofp %42 : vector<8x256xi32> to vector<8x256xf32>
    %cst_27 = arith.constant 1.600000e+01 : f32
    %44 = vector.broadcast %cst_27 : f32 to vector<8x256xf32>
    %45 = arith.divf %43, %44 : vector<8x256xf32>
    %46 = math.floor %45 : vector<8x256xf32>
    %cst_28 = arith.constant 1.600000e+01 : f32
    %47 = vector.broadcast %cst_28 : f32 to vector<8x256xf32>
    %48 = arith.mulf %46, %47 : vector<8x256xf32>
    %49 = arith.subf %43, %48 : vector<8x256xf32>
    %c0_29 = arith.constant 0 : index
    %c0_30 = arith.constant 0 : index
    %c0_31 = arith.constant 0 : index
    %50 = vector.load %arg1[%c0_29, %c0_30, %c0_31] : memref<1x16x256xf32, #tpu.memory_space<vmem>>, vector<1x16x256xf32>
    %51 = vector.shape_cast %50 : vector<1x16x256xf32> to vector<16x256xf32>
    %52 = arith.truncf %51 : vector<16x256xf32> to vector<16x256xbf16>
    %cst_32 = arith.constant dense<0.000000e+00> : vector<32x256xf32>
    %53 = tpu.matmul %0, %52, %cst_32 {dimension_numbers = #tpu.dot_dimension_numbers<[1], [0], [0], [1], [0, 0, 1, 1], [], []>} : vector<32x16xbf16>, vector<16x256xbf16>, vector<32x256xf32> -> vector<32x256xf32>
    %54 = vector.broadcast %2 : vector<32x1xf32> to vector<32x256xf32>
    %55 = arith.addf %53, %54 : vector<32x256xf32>
    %cst_33 = arith.constant 0.000000e+00 : f32
    %56 = vector.broadcast %cst_33 : f32 to vector<32x256xf32>
    %57 = arith.maximumf %55, %56 : vector<32x256xf32>
    %cst_34 = arith.constant 0.000000e+00 : f32
    %58 = vector.broadcast %cst_34 : f32 to vector<32x256xf32>
    %cst_35 = arith.constant 1.000000e+00 : f32
    %59 = vector.broadcast %cst_35 : f32 to vector<1x256xf32>
    %60 = arith.cmpf oge, %10, %59 : vector<1x256xf32>
    %cst_36 = arith.constant 1.600000e+01 : f32
    %61 = vector.broadcast %cst_36 : f32 to vector<1x256xf32>
    %62 = arith.cmpf ole, %10, %61 : vector<1x256xf32>
    %63 = arith.andi %60, %62 : vector<1x256xi1>
    %cst_37 = arith.constant 1.000000e+00 : f32
    %64 = vector.broadcast %cst_37 : f32 to vector<1x256xf32>
    %65 = arith.cmpf oge, %13, %64 : vector<1x256xf32>
    %66 = arith.andi %63, %65 : vector<1x256xi1>
    %cst_38 = arith.constant 1.600000e+01 : f32
    %67 = vector.broadcast %cst_38 : f32 to vector<1x256xf32>
    %68 = arith.cmpf ole, %13, %67 : vector<1x256xf32>
    %69 = arith.andi %66, %68 : vector<1x256xi1>
    %70 = arith.extui %69 : vector<1x256xi1> to vector<1x256xi32>
    %71 = arith.sitofp %70 : vector<1x256xi32> to vector<1x256xf32>
    %c17_i32 = arith.constant 17 : i32
    %72 = tpu.dynamic_rotate %57 by %c17_i32 dim 1 : vector<32x256xf32>, i32 -> vector<32x256xf32>
    %73 = vector.broadcast %71 : vector<1x256xf32> to vector<32x256xf32>
    %74 = arith.mulf %72, %73 : vector<32x256xf32>
    %75 = vector.extract_strided_slice %5 {offsets = [0, 0], sizes = [32, 1], strides = [1, 1]} : vector<32x9xf32> to vector<32x1xf32>
    %76 = vector.broadcast %75 : vector<32x1xf32> to vector<32x256xf32>
    %77 = arith.mulf %74, %76 : vector<32x256xf32>
    %78 = arith.addf %58, %77 : vector<32x256xf32>
    %cst_39 = arith.constant 1.000000e+00 : f32
    %79 = vector.broadcast %cst_39 : f32 to vector<1x256xf32>
    %80 = arith.cmpf oge, %10, %79 : vector<1x256xf32>
    %cst_40 = arith.constant 1.600000e+01 : f32
    %81 = vector.broadcast %cst_40 : f32 to vector<1x256xf32>
    %82 = arith.cmpf ole, %10, %81 : vector<1x256xf32>
    %83 = arith.andi %80, %82 : vector<1x256xi1>
    %cst_41 = arith.constant 0.000000e+00 : f32
    %84 = vector.broadcast %cst_41 : f32 to vector<1x256xf32>
    %85 = arith.cmpf oge, %13, %84 : vector<1x256xf32>
    %86 = arith.andi %83, %85 : vector<1x256xi1>
    %cst_42 = arith.constant 1.500000e+01 : f32
    %87 = vector.broadcast %cst_42 : f32 to vector<1x256xf32>
    %88 = arith.cmpf ole, %13, %87 : vector<1x256xf32>
    %89 = arith.andi %86, %88 : vector<1x256xi1>
    %90 = arith.extui %89 : vector<1x256xi1> to vector<1x256xi32>
    %91 = arith.sitofp %90 : vector<1x256xi32> to vector<1x256xf32>
    %c16_i32 = arith.constant 16 : i32
    %92 = tpu.dynamic_rotate %57 by %c16_i32 dim 1 : vector<32x256xf32>, i32 -> vector<32x256xf32>
    %93 = vector.broadcast %91 : vector<1x256xf32> to vector<32x256xf32>
    %94 = arith.mulf %92, %93 : vector<32x256xf32>
    %95 = vector.extract_strided_slice %5 {offsets = [0, 1], sizes = [32, 1], strides = [1, 1]} : vector<32x9xf32> to vector<32x1xf32>
    %96 = vector.broadcast %95 : vector<32x1xf32> to vector<32x256xf32>
    %97 = arith.mulf %94, %96 : vector<32x256xf32>
    %98 = arith.addf %78, %97 : vector<32x256xf32>
    %cst_43 = arith.constant 1.000000e+00 : f32
    %99 = vector.broadcast %cst_43 : f32 to vector<1x256xf32>
    %100 = arith.cmpf oge, %10, %99 : vector<1x256xf32>
    %cst_44 = arith.constant 1.600000e+01 : f32
    %101 = vector.broadcast %cst_44 : f32 to vector<1x256xf32>
    %102 = arith.cmpf ole, %10, %101 : vector<1x256xf32>
    %103 = arith.andi %100, %102 : vector<1x256xi1>
    %cst_45 = arith.constant -1.000000e+00 : f32
    %104 = vector.broadcast %cst_45 : f32 to vector<1x256xf32>
    %105 = arith.cmpf oge, %13, %104 : vector<1x256xf32>
    %106 = arith.andi %103, %105 : vector<1x256xi1>
    %cst_46 = arith.constant 1.400000e+01 : f32
    %107 = vector.broadcast %cst_46 : f32 to vector<1x256xf32>
    %108 = arith.cmpf ole, %13, %107 : vector<1x256xf32>
    %109 = arith.andi %106, %108 : vector<1x256xi1>
    %110 = arith.extui %109 : vector<1x256xi1> to vector<1x256xi32>
    %111 = arith.sitofp %110 : vector<1x256xi32> to vector<1x256xf32>
    %c15_i32 = arith.constant 15 : i32
    %112 = tpu.dynamic_rotate %57 by %c15_i32 dim 1 : vector<32x256xf32>, i32 -> vector<32x256xf32>
    %113 = vector.broadcast %111 : vector<1x256xf32> to vector<32x256xf32>
    %114 = arith.mulf %112, %113 : vector<32x256xf32>
    %115 = vector.extract_strided_slice %5 {offsets = [0, 2], sizes = [32, 1], strides = [1, 1]} : vector<32x9xf32> to vector<32x1xf32>
    %116 = vector.broadcast %115 : vector<32x1xf32> to vector<32x256xf32>
    %117 = arith.mulf %114, %116 : vector<32x256xf32>
    %118 = arith.addf %98, %117 : vector<32x256xf32>
    %cst_47 = arith.constant 0.000000e+00 : f32
    %119 = vector.broadcast %cst_47 : f32 to vector<1x256xf32>
    %120 = arith.cmpf oge, %10, %119 : vector<1x256xf32>
    %cst_48 = arith.constant 1.500000e+01 : f32
    %121 = vector.broadcast %cst_48 : f32 to vector<1x256xf32>
    %122 = arith.cmpf ole, %10, %121 : vector<1x256xf32>
    %123 = arith.andi %120, %122 : vector<1x256xi1>
    %cst_49 = arith.constant 1.000000e+00 : f32
    %124 = vector.broadcast %cst_49 : f32 to vector<1x256xf32>
    %125 = arith.cmpf oge, %13, %124 : vector<1x256xf32>
    %126 = arith.andi %123, %125 : vector<1x256xi1>
    %cst_50 = arith.constant 1.600000e+01 : f32
    %127 = vector.broadcast %cst_50 : f32 to vector<1x256xf32>
    %128 = arith.cmpf ole, %13, %127 : vector<1x256xf32>
    %129 = arith.andi %126, %128 : vector<1x256xi1>
    %130 = arith.extui %129 : vector<1x256xi1> to vector<1x256xi32>
    %131 = arith.sitofp %130 : vector<1x256xi32> to vector<1x256xf32>
    %c1_i32 = arith.constant 1 : i32
    %132 = tpu.dynamic_rotate %57 by %c1_i32 dim 1 : vector<32x256xf32>, i32 -> vector<32x256xf32>
    %133 = vector.broadcast %131 : vector<1x256xf32> to vector<32x256xf32>
    %134 = arith.mulf %132, %133 : vector<32x256xf32>
    %135 = vector.extract_strided_slice %5 {offsets = [0, 3], sizes = [32, 1], strides = [1, 1]} : vector<32x9xf32> to vector<32x1xf32>
    %136 = vector.broadcast %135 : vector<32x1xf32> to vector<32x256xf32>
    %137 = arith.mulf %134, %136 : vector<32x256xf32>
    %138 = arith.addf %118, %137 : vector<32x256xf32>
    %cst_51 = arith.constant 0.000000e+00 : f32
    %139 = vector.broadcast %cst_51 : f32 to vector<1x256xf32>
    %140 = arith.cmpf oge, %10, %139 : vector<1x256xf32>
    %cst_52 = arith.constant 1.500000e+01 : f32
    %141 = vector.broadcast %cst_52 : f32 to vector<1x256xf32>
    %142 = arith.cmpf ole, %10, %141 : vector<1x256xf32>
    %143 = arith.andi %140, %142 : vector<1x256xi1>
    %cst_53 = arith.constant 0.000000e+00 : f32
    %144 = vector.broadcast %cst_53 : f32 to vector<1x256xf32>
    %145 = arith.cmpf oge, %13, %144 : vector<1x256xf32>
    %146 = arith.andi %143, %145 : vector<1x256xi1>
    %cst_54 = arith.constant 1.500000e+01 : f32
    %147 = vector.broadcast %cst_54 : f32 to vector<1x256xf32>
    %148 = arith.cmpf ole, %13, %147 : vector<1x256xf32>
    %149 = arith.andi %146, %148 : vector<1x256xi1>
    %150 = arith.extui %149 : vector<1x256xi1> to vector<1x256xi32>
    %151 = arith.sitofp %150 : vector<1x256xi32> to vector<1x256xf32>
    %152 = vector.broadcast %151 : vector<1x256xf32> to vector<32x256xf32>
    %153 = arith.mulf %57, %152 : vector<32x256xf32>
    %154 = vector.extract_strided_slice %5 {offsets = [0, 4], sizes = [32, 1], strides = [1, 1]} : vector<32x9xf32> to vector<32x1xf32>
    %155 = vector.broadcast %154 : vector<32x1xf32> to vector<32x256xf32>
    %156 = arith.mulf %153, %155 : vector<32x256xf32>
    %157 = arith.addf %138, %156 : vector<32x256xf32>
    %cst_55 = arith.constant 0.000000e+00 : f32
    %158 = vector.broadcast %cst_55 : f32 to vector<1x256xf32>
    %159 = arith.cmpf oge, %10, %158 : vector<1x256xf32>
    %cst_56 = arith.constant 1.500000e+01 : f32
    %160 = vector.broadcast %cst_56 : f32 to vector<1x256xf32>
    %161 = arith.cmpf ole, %10, %160 : vector<1x256xf32>
    %162 = arith.andi %159, %161 : vector<1x256xi1>
    %cst_57 = arith.constant -1.000000e+00 : f32
    %163 = vector.broadcast %cst_57 : f32 to vector<1x256xf32>
    %164 = arith.cmpf oge, %13, %163 : vector<1x256xf32>
    %165 = arith.andi %162, %164 : vector<1x256xi1>
    %cst_58 = arith.constant 1.400000e+01 : f32
    %166 = vector.broadcast %cst_58 : f32 to vector<1x256xf32>
    %167 = arith.cmpf ole, %13, %166 : vector<1x256xf32>
    %168 = arith.andi %165, %167 : vector<1x256xi1>
    %169 = arith.extui %168 : vector<1x256xi1> to vector<1x256xi32>
    %170 = arith.sitofp %169 : vector<1x256xi32> to vector<1x256xf32>
    %c255_i32 = arith.constant 255 : i32
    %171 = tpu.dynamic_rotate %57 by %c255_i32 dim 1 : vector<32x256xf32>, i32 -> vector<32x256xf32>
    %172 = vector.broadcast %170 : vector<1x256xf32> to vector<32x256xf32>
    %173 = arith.mulf %171, %172 : vector<32x256xf32>
    %174 = vector.extract_strided_slice %5 {offsets = [0, 5], sizes = [32, 1], strides = [1, 1]} : vector<32x9xf32> to vector<32x1xf32>
    %175 = vector.broadcast %174 : vector<32x1xf32> to vector<32x256xf32>
    %176 = arith.mulf %173, %175 : vector<32x256xf32>
    %177 = arith.addf %157, %176 : vector<32x256xf32>
    %cst_59 = arith.constant -1.000000e+00 : f32
    %178 = vector.broadcast %cst_59 : f32 to vector<1x256xf32>
    %179 = arith.cmpf oge, %10, %178 : vector<1x256xf32>
    %cst_60 = arith.constant 1.400000e+01 : f32
    %180 = vector.broadcast %cst_60 : f32 to vector<1x256xf32>
    %181 = arith.cmpf ole, %10, %180 : vector<1x256xf32>
    %182 = arith.andi %179, %181 : vector<1x256xi1>
    %cst_61 = arith.constant 1.000000e+00 : f32
    %183 = vector.broadcast %cst_61 : f32 to vector<1x256xf32>
    %184 = arith.cmpf oge, %13, %183 : vector<1x256xf32>
    %185 = arith.andi %182, %184 : vector<1x256xi1>
    %cst_62 = arith.constant 1.600000e+01 : f32
    %186 = vector.broadcast %cst_62 : f32 to vector<1x256xf32>
    %187 = arith.cmpf ole, %13, %186 : vector<1x256xf32>
    %188 = arith.andi %185, %187 : vector<1x256xi1>
    %189 = arith.extui %188 : vector<1x256xi1> to vector<1x256xi32>
    %190 = arith.sitofp %189 : vector<1x256xi32> to vector<1x256xf32>
    %c241_i32 = arith.constant 241 : i32
    %191 = tpu.dynamic_rotate %57 by %c241_i32 dim 1 : vector<32x256xf32>, i32 -> vector<32x256xf32>
    %192 = vector.broadcast %190 : vector<1x256xf32> to vector<32x256xf32>
    %193 = arith.mulf %191, %192 : vector<32x256xf32>
    %194 = vector.extract_strided_slice %5 {offsets = [0, 6], sizes = [32, 1], strides = [1, 1]} : vector<32x9xf32> to vector<32x1xf32>
    %195 = vector.broadcast %194 : vector<32x1xf32> to vector<32x256xf32>
    %196 = arith.mulf %193, %195 : vector<32x256xf32>
    %197 = arith.addf %177, %196 : vector<32x256xf32>
    %cst_63 = arith.constant -1.000000e+00 : f32
    %198 = vector.broadcast %cst_63 : f32 to vector<1x256xf32>
    %199 = arith.cmpf oge, %10, %198 : vector<1x256xf32>
    %cst_64 = arith.constant 1.400000e+01 : f32
    %200 = vector.broadcast %cst_64 : f32 to vector<1x256xf32>
    %201 = arith.cmpf ole, %10, %200 : vector<1x256xf32>
    %202 = arith.andi %199, %201 : vector<1x256xi1>
    %cst_65 = arith.constant 0.000000e+00 : f32
    %203 = vector.broadcast %cst_65 : f32 to vector<1x256xf32>
    %204 = arith.cmpf oge, %13, %203 : vector<1x256xf32>
    %205 = arith.andi %202, %204 : vector<1x256xi1>
    %cst_66 = arith.constant 1.500000e+01 : f32
    %206 = vector.broadcast %cst_66 : f32 to vector<1x256xf32>
    %207 = arith.cmpf ole, %13, %206 : vector<1x256xf32>
    %208 = arith.andi %205, %207 : vector<1x256xi1>
    %209 = arith.extui %208 : vector<1x256xi1> to vector<1x256xi32>
    %210 = arith.sitofp %209 : vector<1x256xi32> to vector<1x256xf32>
    %c240_i32 = arith.constant 240 : i32
    %211 = tpu.dynamic_rotate %57 by %c240_i32 dim 1 : vector<32x256xf32>, i32 -> vector<32x256xf32>
    %212 = vector.broadcast %210 : vector<1x256xf32> to vector<32x256xf32>
    %213 = arith.mulf %211, %212 : vector<32x256xf32>
    %214 = vector.extract_strided_slice %5 {offsets = [0, 7], sizes = [32, 1], strides = [1, 1]} : vector<32x9xf32> to vector<32x1xf32>
    %215 = vector.broadcast %214 : vector<32x1xf32> to vector<32x256xf32>
    %216 = arith.mulf %213, %215 : vector<32x256xf32>
    %217 = arith.addf %197, %216 : vector<32x256xf32>
    %cst_67 = arith.constant -1.000000e+00 : f32
    %218 = vector.broadcast %cst_67 : f32 to vector<1x256xf32>
    %219 = arith.cmpf oge, %10, %218 : vector<1x256xf32>
    %cst_68 = arith.constant 1.400000e+01 : f32
    %220 = vector.broadcast %cst_68 : f32 to vector<1x256xf32>
    %221 = arith.cmpf ole, %10, %220 : vector<1x256xf32>
    %222 = arith.andi %219, %221 : vector<1x256xi1>
    %cst_69 = arith.constant -1.000000e+00 : f32
    %223 = vector.broadcast %cst_69 : f32 to vector<1x256xf32>
    %224 = arith.cmpf oge, %13, %223 : vector<1x256xf32>
    %225 = arith.andi %222, %224 : vector<1x256xi1>
    %cst_70 = arith.constant 1.400000e+01 : f32
    %226 = vector.broadcast %cst_70 : f32 to vector<1x256xf32>
    %227 = arith.cmpf ole, %13, %226 : vector<1x256xf32>
    %228 = arith.andi %225, %227 : vector<1x256xi1>
    %229 = arith.extui %228 : vector<1x256xi1> to vector<1x256xi32>
    %230 = arith.sitofp %229 : vector<1x256xi32> to vector<1x256xf32>
    %c239_i32 = arith.constant 239 : i32
    %231 = tpu.dynamic_rotate %57 by %c239_i32 dim 1 : vector<32x256xf32>, i32 -> vector<32x256xf32>
    %232 = vector.broadcast %230 : vector<1x256xf32> to vector<32x256xf32>
    %233 = arith.mulf %231, %232 : vector<32x256xf32>
    %234 = vector.extract_strided_slice %5 {offsets = [0, 8], sizes = [32, 1], strides = [1, 1]} : vector<32x9xf32> to vector<32x1xf32>
    %235 = vector.broadcast %234 : vector<32x1xf32> to vector<32x256xf32>
    %236 = arith.mulf %233, %235 : vector<32x256xf32>
    %237 = arith.addf %217, %236 : vector<32x256xf32>
    %238 = vector.broadcast %3 : vector<32x1xf32> to vector<32x256xf32>
    %239 = arith.addf %237, %238 : vector<32x256xf32>
    %cst_71 = arith.constant 0.000000e+00 : f32
    %240 = vector.broadcast %cst_71 : f32 to vector<32x256xf32>
    %241 = arith.maximumf %239, %240 : vector<32x256xf32>
    %242 = arith.truncf %241 : vector<32x256xf32> to vector<32x256xbf16>
    %cst_72 = arith.constant dense<0.000000e+00> : vector<16x256xf32>
    %243 = tpu.matmul %1, %242, %cst_72 {dimension_numbers = #tpu.dot_dimension_numbers<[1], [0], [0], [1], [0, 0, 1, 1], [], []>} : vector<16x32xbf16>, vector<32x256xbf16>, vector<16x256xf32> -> vector<16x256xf32>
    %244 = vector.broadcast %4 : vector<16x1xf32> to vector<16x256xf32>
    %245 = arith.addf %243, %244 : vector<16x256xf32>
    %cst_73 = arith.constant dense<0.000000e+00> : vector<8x256xf32>
    %246 = tpu.matmul %23, %245, %cst_73 {dimension_numbers = #tpu.dot_dimension_numbers<[1], [0], [0], [1], [0, 0, 1, 1], [], []>} : vector<8x16xf32>, vector<16x256xf32>, vector<8x256xf32> -> vector<8x256xf32>
    %cst_74 = arith.constant dense<0xFF800000> : vector<8xf32>
    %247 = vector.multi_reduction <maximumf>, %246, %cst_74 [1] : vector<8x256xf32> to vector<8xf32>
    %248 = vector.shape_cast %247 : vector<8xf32> to vector<8x1xf32>
    %249 = vector.broadcast %248 : vector<8x1xf32> to vector<8x256xf32>
    %250 = arith.cmpf oeq, %246, %249 : vector<8x256xf32>
    %c256_i32 = arith.constant 256 : i32
    %251 = vector.broadcast %c256_i32 : i32 to vector<8x256xi32>
    %252 = arith.select %250, %42, %251 : vector<8x256xi1>, vector<8x256xi32>
    %cst_75 = arith.constant dense<2147483647> : vector<8xi32>
    %253 = vector.multi_reduction <minsi>, %252, %cst_75 [1] : vector<8x256xi32> to vector<8xi32>
    %254 = vector.shape_cast %253 : vector<8xi32> to vector<8x1xi32>
    %255 = vector.broadcast %254 : vector<8x1xi32> to vector<8x256xi32>
    %256 = arith.cmpi eq, %42, %255 : vector<8x256xi32>
    %257 = arith.extui %256 : vector<8x256xi1> to vector<8x256xi32>
    %258 = arith.sitofp %257 : vector<8x256xi32> to vector<8x256xf32>
    %cst_76 = arith.constant dense<0.000000e+00> : vector<16x256xf32>
    %259 = tpu.matmul %33, %258, %cst_76 {dimension_numbers = #tpu.dot_dimension_numbers<[1], [0], [0], [1], [0, 0, 1, 1], [], []>} : vector<16x8xf32>, vector<8x256xf32>, vector<16x256xf32> -> vector<16x256xf32>
    %260 = arith.mulf %245, %259 : vector<16x256xf32>
    %cst_77 = arith.constant dense<0.000000e+00> : vector<16xf32>
    %261 = vector.multi_reduction <add>, %260, %cst_77 [1] : vector<16x256xf32> to vector<16xf32>
    %262 = vector.shape_cast %261 : vector<16xf32> to vector<16x1xf32>
    %cst_78 = arith.constant dense<0.000000e+00> : vector<16xf32>
    %263 = vector.multi_reduction <add>, %245, %cst_78 [1] : vector<16x256xf32> to vector<16xf32>
    %264 = vector.shape_cast %263 : vector<16xf32> to vector<16x1xf32>
    %cst_79 = arith.constant 2.560000e+02 : f32
    %265 = vector.broadcast %cst_79 : f32 to vector<16x1xf32>
    %266 = arith.divf %264, %265 : vector<16x1xf32>
    %267 = vector.broadcast %262 : vector<16x1xf32> to vector<16x256xf32>
    %268 = arith.mulf %267, %245 : vector<16x256xf32>
    %cst_80 = arith.constant dense<0.000000e+00> : vector<8x256xf32>
    %269 = tpu.matmul %23, %268, %cst_80 {dimension_numbers = #tpu.dot_dimension_numbers<[1], [0], [0], [1], [0, 0, 1, 1], [], []>} : vector<8x16xf32>, vector<16x256xf32>, vector<8x256xf32> -> vector<8x256xf32>
    %270 = vector.broadcast %266 : vector<16x1xf32> to vector<16x256xf32>
    %271 = arith.mulf %270, %245 : vector<16x256xf32>
    %cst_81 = arith.constant dense<0.000000e+00> : vector<8x256xf32>
    %272 = tpu.matmul %23, %271, %cst_81 {dimension_numbers = #tpu.dot_dimension_numbers<[1], [0], [0], [1], [0, 0, 1, 1], [], []>} : vector<8x16xf32>, vector<16x256xf32>, vector<8x256xf32> -> vector<8x256xf32>
    %273 = arith.sitofp %254 : vector<8x1xi32> to vector<8x1xf32>
    %cst_82 = arith.constant 1.600000e+01 : f32
    %274 = vector.broadcast %cst_82 : f32 to vector<8x1xf32>
    %275 = arith.divf %273, %274 : vector<8x1xf32>
    %276 = math.floor %275 : vector<8x1xf32>
    %cst_83 = arith.constant 1.600000e+01 : f32
    %277 = vector.broadcast %cst_83 : f32 to vector<8x1xf32>
    %278 = arith.mulf %276, %277 : vector<8x1xf32>
    %279 = arith.subf %273, %278 : vector<8x1xf32>
    %280 = vector.broadcast %276 : vector<8x1xf32> to vector<8x256xf32>
    %281 = arith.subf %46, %280 : vector<8x256xf32>
    %282 = math.absf %281 : vector<8x256xf32>
    %283 = vector.broadcast %34 : f32 to vector<8x256xf32>
    %284 = arith.mulf %282, %283 : vector<8x256xf32>
    %285 = vector.broadcast %279 : vector<8x1xf32> to vector<8x256xf32>
    %286 = arith.subf %49, %285 : vector<8x256xf32>
    %287 = math.absf %286 : vector<8x256xf32>
    %288 = vector.broadcast %35 : f32 to vector<8x256xf32>
    %289 = arith.mulf %287, %288 : vector<8x256xf32>
    %290 = arith.mulf %284, %284 : vector<8x256xf32>
    %cst_84 = arith.constant 0.000000e+00 : f32
    %291 = vector.broadcast %cst_84 : f32 to vector<8x256xf32>
    %292 = arith.subf %291, %290 : vector<8x256xf32>
    %293 = vector.broadcast %37 : f32 to vector<8x256xf32>
    %294 = arith.mulf %292, %293 : vector<8x256xf32>
    %295 = math.exp %294 : vector<8x256xf32>
    %296 = vector.broadcast %36 : f32 to vector<8x256xf32>
    %297 = arith.mulf %295, %296 : vector<8x256xf32>
    %298 = arith.mulf %289, %289 : vector<8x256xf32>
    %cst_85 = arith.constant 0.000000e+00 : f32
    %299 = vector.broadcast %cst_85 : f32 to vector<8x256xf32>
    %300 = arith.subf %299, %298 : vector<8x256xf32>
    %301 = vector.broadcast %37 : f32 to vector<8x256xf32>
    %302 = arith.mulf %300, %301 : vector<8x256xf32>
    %303 = math.exp %302 : vector<8x256xf32>
    %304 = vector.broadcast %36 : f32 to vector<8x256xf32>
    %305 = arith.mulf %303, %304 : vector<8x256xf32>
    %306 = arith.addf %297, %305 : vector<8x256xf32>
    %cst_86 = arith.constant 5.000000e-01 : f32
    %307 = vector.broadcast %cst_86 : f32 to vector<8x256xf32>
    %308 = arith.mulf %307, %306 : vector<8x256xf32>
    %309 = arith.mulf %269, %308 : vector<8x256xf32>
    %310 = vector.broadcast %38 : vector<8x1xf32> to vector<8x256xf32>
    %311 = arith.mulf %309, %310 : vector<8x256xf32>
    %312 = vector.broadcast %39 : vector<8x1xf32> to vector<8x256xf32>
    %313 = arith.mulf %272, %312 : vector<8x256xf32>
    %314 = arith.addf %311, %313 : vector<8x256xf32>
    %cst_87 = arith.constant dense<0.000000e+00> : vector<8xf32>
    %315 = vector.multi_reduction <add>, %314, %cst_87 [1] : vector<8x256xf32> to vector<8xf32>
    %316 = vector.shape_cast %315 : vector<8xf32> to vector<8x1xf32>
    %cst_88 = arith.constant 2.560000e+02 : f32
    %317 = vector.broadcast %cst_88 : f32 to vector<8x1xf32>
    %318 = arith.divf %316, %317 : vector<8x1xf32>
    %319 = vector.broadcast %318 : vector<8x1xf32> to vector<8x256xf32>
    %320 = arith.subf %314, %319 : vector<8x256xf32>
    %321 = arith.mulf %320, %320 : vector<8x256xf32>
    %cst_89 = arith.constant dense<0.000000e+00> : vector<8xf32>
    %322 = vector.multi_reduction <add>, %321, %cst_89 [1] : vector<8x256xf32> to vector<8xf32>
    %323 = vector.shape_cast %322 : vector<8xf32> to vector<8x1xf32>
    %cst_90 = arith.constant 0.00392156886 : f32
    %324 = vector.broadcast %cst_90 : f32 to vector<8x1xf32>
    %325 = arith.mulf %323, %324 : vector<8x1xf32>
    %326 = math.sqrt %325 : vector<8x1xf32>
    %cst_91 = arith.constant 9.99999974E-6 : f32
    %327 = vector.broadcast %cst_91 : f32 to vector<8x1xf32>
    %328 = arith.addf %326, %327 : vector<8x1xf32>
    %329 = tpu.reciprocal %328 {approx = true} : vector<8x1xf32> -> vector<8x1xf32>
    %330 = vector.broadcast %329 : vector<8x1xf32> to vector<8x256xf32>
    %331 = arith.mulf %320, %330 : vector<8x256xf32>
    %332 = vector.broadcast %40 : vector<8x1xf32> to vector<8x256xf32>
    %333 = arith.mulf %331, %332 : vector<8x256xf32>
    %334 = vector.broadcast %41 : vector<8x1xf32> to vector<8x256xf32>
    %335 = arith.addf %333, %334 : vector<8x256xf32>
    %336 = arith.negf %335 : vector<8x256xf32>
    %337 = math.exp %336 : vector<8x256xf32>
    %cst_92 = arith.constant 1.000000e+00 : f32
    %338 = vector.broadcast %cst_92 : f32 to vector<8x256xf32>
    %339 = arith.addf %338, %337 : vector<8x256xf32>
    %340 = arith.divf %338, %339 : vector<8x256xf32>
    %cst_93 = arith.constant dense<0.000000e+00> : vector<16x256xf32>
    %341 = tpu.matmul %33, %340, %cst_93 {dimension_numbers = #tpu.dot_dimension_numbers<[1], [0], [0], [1], [0, 0, 1, 1], [], []>} : vector<16x8xf32>, vector<8x256xf32>, vector<16x256xf32> -> vector<16x256xf32>
    %342 = arith.mulf %245, %341 : vector<16x256xf32>
    %343 = arith.addf %342, %51 : vector<16x256xf32>
    %c0_94 = arith.constant 0 : index
    %c0_95 = arith.constant 0 : index
    %c0_96 = arith.constant 0 : index
    %344 = vector.load %arg10[%c0_94, %c0_95, %c0_96] : memref<1x16x256xf32, #tpu.memory_space<vmem>>, vector<1x16x256xf32>
    %345 = vector.shape_cast %344 : vector<1x16x256xf32> to vector<16x256xf32>
    %346 = vector.shape_cast %343 : vector<16x256xf32> to vector<1x16x256xf32>
    tpu.vector_store %arg10[%c0_94, %c0_95, %c0_96], %346 {strides = array<i32>} : memref<1x16x256xf32, #tpu.memory_space<vmem>>, vector<1x16x256xf32>,
    return
  }
  func.func @transform_0(%arg0: i32) -> (i32, i32, i32) {
    %c0_i32 = arith.constant 0 : i32
    %c0_i32_0 = arith.constant 0 : i32
    %c0_i32_1 = arith.constant 0 : i32
    return %arg0, %c0_i32, %c0_i32_0 : i32, i32, i32
  }
  func.func @transform_1(%arg0: i32) -> (i32, i32) {
    %c0_i32 = arith.constant 0 : i32
    %c0_i32_0 = arith.constant 0 : i32
    %c0_i32_1 = arith.constant 0 : i32
    return %c0_i32, %c0_i32_0 : i32, i32
  }
  func.func @transform_2(%arg0: i32) -> (i32, i32) {
    %c0_i32 = arith.constant 0 : i32
    %c0_i32_0 = arith.constant 0 : i32
    %c0_i32_1 = arith.constant 0 : i32
    return %c0_i32, %c0_i32_0 : i32, i32
  }
  func.func @transform_3(%arg0: i32) -> (i32, i32) {
    %c0_i32 = arith.constant 0 : i32
    %c0_i32_0 = arith.constant 0 : i32
    %c0_i32_1 = arith.constant 0 : i32
    return %c0_i32, %c0_i32_0 : i32, i32
  }
  func.func @transform_4(%arg0: i32) -> (i32, i32) {
    %c0_i32 = arith.constant 0 : i32
    %c0_i32_0 = arith.constant 0 : i32
    %c0_i32_1 = arith.constant 0 : i32
    return %c0_i32, %c0_i32_0 : i32, i32
  }
  func.func @transform_5(%arg0: i32) -> (i32, i32) {
    %c0_i32 = arith.constant 0 : i32
    %c0_i32_0 = arith.constant 0 : i32
    %c0_i32_1 = arith.constant 0 : i32
    return %c0_i32, %c0_i32_0 : i32, i32
  }
  func.func @transform_6(%arg0: i32) -> (i32, i32) {
    %c0_i32 = arith.constant 0 : i32
    %c0_i32_0 = arith.constant 0 : i32
    %c0_i32_1 = arith.constant 0 : i32
    return %c0_i32, %c0_i32_0 : i32, i32
  }
  func.func @transform_7(%arg0: i32) -> (i32, i32) {
    %c0_i32 = arith.constant 0 : i32
    %c0_i32_0 = arith.constant 0 : i32
    %c0_i32_1 = arith.constant 0 : i32
    return %c0_i32, %c0_i32_0 : i32, i32
  }
  func.func @transform_8(%arg0: i32) -> (i32, i32) {
    %c0_i32 = arith.constant 0 : i32
    %c0_i32_0 = arith.constant 0 : i32
    %c0_i32_1 = arith.constant 0 : i32
    return %c0_i32, %c0_i32_0 : i32, i32
  }
  func.func @transform_9(%arg0: i32) -> (i32, i32, i32) {
    %c0_i32 = arith.constant 0 : i32
    %c0_i32_0 = arith.constant 0 : i32
    %c0_i32_1 = arith.constant 0 : i32
    return %arg0, %c0_i32, %c0_i32_0 : i32, i32, i32
  }
}

</mosaic_0001>

<llo_original>
// kernel: inverted_residual_forward.1
$region0: #{inverted_residual_forward.1}
  #allocation0 [shape = 'u32[]', space=smem, size = 0x4, offset = 0x4, fixed_abs, tag = 'smem constant byte address 0x4 - core index']
  #allocation1 [shape = 'u32[144,128]{1,0:T(1,128)}', space=vmem, size = 0x12000, scoped, tag = 'internal scratch']
  %s0 = inlined_call_operand.vmem [shape: f32[2,16,256], index: 0, kind: input, shape index: {}]
  %s1 = inlined_call_operand.vmem [shape: bf16[32,16], index: 1, kind: input, shape index: {}]
  %s2 = inlined_call_operand.vmem [shape: f32[32,1], index: 2, kind: input, shape index: {}]
  %s3 = inlined_call_operand.vmem [shape: f32[32,9], index: 3, kind: input, shape index: {}]
  %s4 = inlined_call_operand.vmem [shape: f32[32,1], index: 4, kind: input, shape index: {}]
  %s5 = inlined_call_operand.vmem [shape: bf16[16,32], index: 5, kind: input, shape index: {}]
  %s6 = inlined_call_operand.vmem [shape: f32[16,1], index: 6, kind: input, shape index: {}]
  %s7 = inlined_call_operand.vmem [shape: f32[8,4], index: 7, kind: input, shape index: {}]
  %s8 = inlined_call_operand.vmem [shape: f32[1,4], index: 8, kind: input, shape index: {}]
  %s9 = inlined_call_operand.vmem [shape: f32[2,16,256], index: 9, kind: output, shape index: {}]
  %s10 = sld [smem:[#allocation0]]
  $region73: #{inverted_residual_forward.1} parent=0
    _
  %s12 = ssub.s32 1, %s10
  %s13 = scalar_select 0, %s12, %s10
  $region1: #{inverted_residual_forward.1} parent=0
    #allocation2 [shape = 'u8[512]{0}', space=smem, size = 0x200, scoped, tag = 'input window, operand 8, single buffered']
    #allocation3 [shape = 's32[2]{0}', space=sflag, size = 0x8, scoped, tag = 'scoped memory for inverted_residual_forward.1']
    %14 = vsyncpa [#allocation3], 0
    loop: start=0, step=1, limit=4
    $region2: #{inverted_residual_forward.1} parent=1 // loop_pre_header
      _
    $region3: #{inverted_residual_forward.1} parent=1 // loop_header
      %s16 = sphi 0, %s20
      %p17 = scmp.ge.s32.totalorder %s16, 4
      %s26 = sphi 0, %s28
      %s29 = sphi 0, %s26
      %s30 = sphi 0, %s29
      %s46 = sphi 0, %s30
      %s50 = sphi 0, %s50
      %s52 = sphi 0, %s50
      %s53 = sphi 0, %s52
      %s67 = sphi 0, %s53
      %s71 = sphi 0, %s71
      %s73 = sphi 0, %s71
      %s74 = sphi 0, %s73
      %s88 = sphi 0, %s74
      %s92 = sphi 0, %s92
      %s94 = sphi 0, %s92
      %s95 = sphi 0, %s94
      %s109 = sphi 0, %s95
      %s113 = sphi 0, %s113
      %s115 = sphi 0, %s113
      %s116 = sphi 0, %s115
      %s130 = sphi 0, %s116
      %s134 = sphi 0, %s134
      %s136 = sphi 0, %s134
      %s137 = sphi 0, %s136
      %s151 = sphi 0, %s137
      %s155 = sphi 0, %s155
      %s157 = sphi 0, %s155
      %s158 = sphi 0, %s157
      %s172 = sphi 0, %s158
      %s176 = sphi 0, %s176
      %s178 = sphi 0, %s176
      %s179 = sphi 0, %s178
      %s193 = sphi 0, %s179
      %s197 = sphi 0, %s197
      %s199 = sphi 0, %s197
      %s200 = sphi 0, %s199
      %s214 = sphi 0, %s200
      %s220 = sphi 0, %s222
      %s223 = sphi 0, %s220
      %s224 = sphi 0, %s223
      %s240 = sphi 0, %s224
    $region4: #{inverted_residual_forward.1} parent=1 // loop_header_branch
      %19 = sbr.rel (%p17) target = $region8
    $region5: #{inverted_residual_forward.1} parent=1 // loop_body
      %s21 = ssub.s32 %s16, 1
      %s22 = ssub.s32 %s16, 2
      %s23 = sadd.s32 %s16, 1
      %s24 = ssub.s32 %s16, %s23
      %p25 = scmp.eq.s32.totalorder %s24, 0
      %s27 = sadd.s32 %s26, 1
      %s28 = scalar_select %p25, %s26, %s27
      %p31 = pneg %p25
      %p32 = scmp.eq.s32.totalorder %s16, 1
      %p33 = por %p31, %p32
      %p34 = scmp.ne.s32.totalorder %s26, %s29
      %p35 = scmp.eq.s32.totalorder %s16, 0
      %p36 = por %p34, %p35
      %p37 = scmp.ne.s32.totalorder %s26, %s29
      %p38 = scmp.eq.s32.totalorder %s21, 1
      %p39 = por %p37, %p38
      %p40 = scmp.ne.s32.totalorder %s29, %s30
      %p41 = scmp.eq.s32.totalorder %s21, 0
      %p42 = por %p40, %p41
      %p43 = scmp.ne.s32.totalorder %s29, %s30
      %p44 = scmp.eq.s32.totalorder %s22, 1
      %p45 = por %p43, %p44
      %p47 = scmp.ne.s32.totalorder %s30, %s46
      %p48 = scmp.eq.s32.totalorder %s22, 0
      %p49 = por %p47, %p48
      %s51 = sadd.s32 %s50, 1
      %p54 = scmp.eq.s32.totalorder %s16, 1
      %p55 = scmp.ne.s32.totalorder %s50, %s52
      %p56 = scmp.eq.s32.totalorder %s16, 0
      %p57 = por %p55, %p56
      %p58 = scmp.ne.s32.totalorder %s50, %s52
      %p59 = scmp.eq.s32.totalorder %s21, 1
      %p60 = por %p58, %p59
      %p61 = scmp.ne.s32.totalorder %s52, %s53
      %p62 = scmp.eq.s32.totalorder %s21, 0
      %p63 = por %p61, %p62
      %p64 = scmp.ne.s32.totalorder %s52, %s53
      %p65 = scmp.eq.s32.totalorder %s22, 1
      %p66 = por %p64, %p65
      %p68 = scmp.ne.s32.totalorder %s53, %s67
      %p69 = scmp.eq.s32.totalorder %s22, 0
      %p70 = por %p68, %p69
      %s72 = sadd.s32 %s71, 1
      %p75 = scmp.eq.s32.totalorder %s16, 1
      %p76 = scmp.ne.s32.totalorder %s71, %s73
      %p77 = scmp.eq.s32.totalorder %s16, 0
      %p78 = por %p76, %p77
      %p79 = scmp.ne.s32.totalorder %s71, %s73
      %p80 = scmp.eq.s32.totalorder %s21, 1
      %p81 = por %p79, %p80
      %p82 = scmp.ne.s32.totalorder %s73, %s74
      %p83 = scmp.eq.s32.totalorder %s21, 0
      %p84 = por %p82, %p83
      %p85 = scmp.ne.s32.totalorder %s73, %s74
      %p86 = scmp.eq.s32.totalorder %s22, 1
      %p87 = por %p85, %p86
      %p89 = scmp.ne.s32.totalorder %s74, %s88
      %p90 = scmp.eq.s32.totalorder %s22, 0
      %p91 = por %p89, %p90
      %s93 = sadd.s32 %s92, 1
      %p96 = scmp.eq.s32.totalorder %s16, 1
      %p97 = scmp.ne.s32.totalorder %s92, %s94
      %p98 = scmp.eq.s32.totalorder %s16, 0
      %p99 = por %p97, %p98
      %p100 = scmp.ne.s32.totalorder %s92, %s94
      %p101 = scmp.eq.s32.totalorder %s21, 1
      %p102 = por %p100, %p101
      %p103 = scmp.ne.s32.totalorder %s94, %s95
      %p104 = scmp.eq.s32.totalorder %s21, 0
      %p105 = por %p103, %p104
      %p106 = scmp.ne.s32.totalorder %s94, %s95
      %p107 = scmp.eq.s32.totalorder %s22, 1
      %p108 = por %p106, %p107
      %p110 = scmp.ne.s32.totalorder %s95, %s109
      %p111 = scmp.eq.s32.totalorder %s22, 0
      %p112 = por %p110, %p111
      %s114 = sadd.s32 %s113, 1
      %p117 = scmp.eq.s32.totalorder %s16, 1
      %p118 = scmp.ne.s32.totalorder %s113, %s115
      %p119 = scmp.eq.s32.totalorder %s16, 0
      %p120 = por %p118, %p119
      %p121 = scmp.ne.s32.totalorder %s113, %s115
      %p122 = scmp.eq.s32.totalorder %s21, 1
      %p123 = por %p121, %p122
      %p124 = scmp.ne.s32.totalorder %s115, %s116
      %p125 = scmp.eq.s32.totalorder %s21, 0
      %p126 = por %p124, %p125
      %p127 = scmp.ne.s32.totalorder %s115, %s116
      %p128 = scmp.eq.s32.totalorder %s22, 1
      %p129 = por %p127, %p128
      %p131 = scmp.ne.s32.totalorder %s116, %s130
      %p132 = scmp.eq.s32.totalorder %s22, 0
      %p133 = por %p131, %p132
      %s135 = sadd.s32 %s134, 1
      %p138 = scmp.eq.s32.totalorder %s16, 1
      %p139 = scmp.ne.s32.totalorder %s134, %s136
      %p140 = scmp.eq.s32.totalorder %s16, 0
      %p141 = por %p139, %p140
      %p142 = scmp.ne.s32.totalorder %s134, %s136
      %p143 = scmp.eq.s32.totalorder %s21, 1
      %p144 = por %p142, %p143
      %p145 = scmp.ne.s32.totalorder %s136, %s137
      %p146 = scmp.eq.s32.totalorder %s21, 0
      %p147 = por %p145, %p146
      %p148 = scmp.ne.s32.totalorder %s136, %s137
      %p149 = scmp.eq.s32.totalorder %s22, 1
      %p150 = por %p148, %p149
      %p152 = scmp.ne.s32.totalorder %s137, %s151
      %p153 = scmp.eq.s32.totalorder %s22, 0
      %p154 = por %p152, %p153
      %s156 = sadd.s32 %s155, 1
      %p159 = scmp.eq.s32.totalorder %s16, 1
      %p160 = scmp.ne.s32.totalorder %s155, %s157
      %p161 = scmp.eq.s32.totalorder %s16, 0
      %p162 = por %p160, %p161
      %p163 = scmp.ne.s32.totalorder %s155, %s157
      %p164 = scmp.eq.s32.totalorder %s21, 1
      %p165 = por %p163, %p164
      %p166 = scmp.ne.s32.totalorder %s157, %s158
      %p167 = scmp.eq.s32.totalorder %s21, 0
      %p168 = por %p166, %p167
      %p169 = scmp.ne.s32.totalorder %s157, %s158
      %p170 = scmp.eq.s32.totalorder %s22, 1
      %p171 = por %p169, %p170
      %p173 = scmp.ne.s32.totalorder %s158, %s172
      %p174 = scmp.eq.s32.totalorder %s22, 0
      %p175 = por %p173, %p174
      %s177 = sadd.s32 %s176, 1
      %p180 = scmp.eq.s32.totalorder %s16, 1
      %p181 = scmp.ne.s32.totalorder %s176, %s178
      %p182 = scmp.eq.s32.totalorder %s16, 0
      %p183 = por %p181, %p182
      %p184 = scmp.ne.s32.totalorder %s176, %s178
      %p185 = scmp.eq.s32.totalorder %s21, 1
      %p186 = por %p184, %p185
      %p187 = scmp.ne.s32.totalorder %s178, %s179
      %p188 = scmp.eq.s32.totalorder %s21, 0
      %p189 = por %p187, %p188
      %p190 = scmp.ne.s32.totalorder %s178, %s179
      %p191 = scmp.eq.s32.totalorder %s22, 1
      %p192 = por %p190, %p191
      %p194 = scmp.ne.s32.totalorder %s179, %s193
      %p195 = scmp.eq.s32.totalorder %s22, 0
      %p196 = por %p194, %p195
      %s198 = sadd.s32 %s197, 1
      %p201 = scmp.eq.s32.totalorder %s16, 1
      %p202 = scmp.ne.s32.totalorder %s197, %s199
      %p203 = scmp.eq.s32.totalorder %s16, 0
      %p204 = por %p202, %p203
      %p205 = scmp.ne.s32.totalorder %s197, %s199
      %p206 = scmp.eq.s32.totalorder %s21, 1
      %p207 = por %p205, %p206
      %p208 = scmp.ne.s32.totalorder %s199, %s200
      %p209 = scmp.eq.s32.totalorder %s21, 0
      %p210 = por %p208, %p209
      %p211 = scmp.ne.s32.totalorder %s199, %s200
      %p212 = scmp.eq.s32.totalorder %s22, 1
      %p213 = por %p211, %p212
      %p215 = scmp.ne.s32.totalorder %s200, %s214
      %p216 = scmp.eq.s32.totalorder %s22, 0
      %p217 = por %p215, %p216
      %s218 = ssub.s32 %s16, %s23
      %p219 = scmp.eq.s32.totalorder %s218, 0
      %s221 = sadd.s32 %s220, 1
      %s222 = scalar_select %p219, %s220, %s221
      %p225 = pneg %p219
      %p226 = scmp.eq.s32.totalorder %s16, 1
      %p227 = por %p225, %p226
      %p228 = scmp.ne.s32.totalorder %s220, %s223
      %p229 = scmp.eq.s32.totalorder %s16, 0
      %p230 = por %p228, %p229
      %p231 = scmp.ne.s32.totalorder %s220, %s223
      %p232 = scmp.eq.s32.totalorder %s21, 1
      %p233 = por %p231, %p232
      %p234 = scmp.ne.s32.totalorder %s223, %s224
      %p235 = scmp.eq.s32.totalorder %s21, 0
      %p236 = por %p234, %p235
      %p237 = scmp.ne.s32.totalorder %s223, %s224
      %p238 = scmp.eq.s32.totalorder %s22, 1
      %p239 = por %p237, %p238
      %p241 = scmp.ne.s32.totalorder %s224, %s240
      %p242 = scmp.eq.s32.totalorder %s22, 0
      %p243 = por %p241, %p242
      %p244 = scmp.le.s32.totalorder 1, %s16
      %p245 = scmp.lt.s32.totalorder %s16, 3
      %p246 = pnand %p244, %p245
      %p247 = pneg %p246
      // Predicated region
      $region9: #{inverted_residual_forward.1} parent=5 // pred_check
        _
      $region10: #{inverted_residual_forward.1} parent=5 // pred_check_branch
        %249 = sbr.rel (%p246) target = $region12
      $region11: #{inverted_residual_forward.1} parent=5 // pred_region
        %s250 = ssub.s32 %s16, 1
        // Predicated region
        $region13: #{inverted_residual_forward.1} parent=11 // pred_check
          %p251 = pneg %p63
        $region14: #{inverted_residual_forward.1} parent=11 // pred_check_branch
          %253 = sbr.rel (%p251) target = $region16
        $region15: #{inverted_residual_forward.1} parent=11 // pred_region
          _
        $region16: #{inverted_residual_forward.1} parent=11 // pred_fallthru
          _
        // Predicated region
        $region17: #{inverted_residual_forward.1} parent=11 // pred_check
          %p254 = pneg %p84
        $region18: #{inverted_residual_forward.1} parent=11 // pred_check_branch
          %256 = sbr.rel (%p254) target = $region20
        $region19: #{inverted_residual_forward.1} parent=11 // pred_region
          _
        $region20: #{inverted_residual_forward.1} parent=11 // pred_fallthru
          _
        // Predicated region
        $region21: #{inverted_residual_forward.1} parent=11 // pred_check
          %p257 = pneg %p105
        $region22: #{inverted_residual_forward.1} parent=11 // pred_check_branch
          %259 = sbr.rel (%p257) target = $region24
        $region23: #{inverted_residual_forward.1} parent=11 // pred_region
          _
        $region24: #{inverted_residual_forward.1} parent=11 // pred_fallthru
          _
        // Predicated region
        $region25: #{inverted_residual_forward.1} parent=11 // pred_check
          %p260 = pneg %p126
        $region26: #{inverted_residual_forward.1} parent=11 // pred_check_branch
          %262 = sbr.rel (%p260) target = $region28
        $region27: #{inverted_residual_forward.1} parent=11 // pred_region
          _
        $region28: #{inverted_residual_forward.1} parent=11 // pred_fallthru
          _
        // Predicated region
        $region29: #{inverted_residual_forward.1} parent=11 // pred_check
          %p263 = pneg %p147
        $region30: #{inverted_residual_forward.1} parent=11 // pred_check_branch
          %265 = sbr.rel (%p263) target = $region32
        $region31: #{inverted_residual_forward.1} parent=11 // pred_region
          _
        $region32: #{inverted_residual_forward.1} parent=11 // pred_fallthru
          _
        // Predicated region
        $region33: #{inverted_residual_forward.1} parent=11 // pred_check
          %p266 = pneg %p168
        $region34: #{inverted_residual_forward.1} parent=11 // pred_check_branch
          %268 = sbr.rel (%p266) target = $region36
        $region35: #{inverted_residual_forward.1} parent=11 // pred_region
          _
        $region36: #{inverted_residual_forward.1} parent=11 // pred_fallthru
          _
        // Predicated region
        $region37: #{inverted_residual_forward.1} parent=11 // pred_check
          %p269 = pneg %p189
        $region38: #{inverted_residual_forward.1} parent=11 // pred_check_branch
          %271 = sbr.rel (%p269) target = $region40
        $region39: #{inverted_residual_forward.1} parent=11 // pred_region
          _
        $region40: #{inverted_residual_forward.1} parent=11 // pred_fallthru
          _
        // Predicated region
        $region41: #{inverted_residual_forward.1} parent=11 // pred_check
          %p272 = pneg %p210
        $region42: #{inverted_residual_forward.1} parent=11 // pred_check_branch
          %274 = sbr.rel (%p272) target = $region44
        $region43: #{inverted_residual_forward.1} parent=11 // pred_region
          %s276 = ssub.s32 16, 16
          %277 = vsyncadd [#allocation3], %s276
          %s279 = sshll.u32 %s8, 4
          %s280 = int_to_ptr.vmem [resolvable:$true] %s279
          %282 = dma.vmem_to_smem %s280, 16, [#allocation2], [#allocation3]
        $region44: #{inverted_residual_forward.1} parent=11 // pred_fallthru
          _
      $region12: #{inverted_residual_forward.1} parent=5 // pred_fallthru
        _
      %p283 = scmp.lt.s32.totalorder %s16, 2
      // Predicated region
      $region45: #{inverted_residual_forward.1} parent=5 // pred_check
        %p284 = pneg %p283
      $region46: #{inverted_residual_forward.1} parent=5 // pred_check_branch
        %286 = sbr.rel (%p284) target = $region48
      $region47: #{inverted_residual_forward.1} parent=5 // pred_region
        // Predicated region
        $region49: #{inverted_residual_forward.1} parent=47 // pred_check
          %p287 = pneg %p36
        $region50: #{inverted_residual_forward.1} parent=47 // pred_check_branch
          %289 = sbr.rel (%p287) target = $region52
        $region51: #{inverted_residual_forward.1} parent=47 // pred_region
          %p290 = scmp.lt.s32.totalorder %s16, 1
          %s291 = scalar_select %p290, %s16, 1
          %s292 = smul.addr %s291, 4
          %s293 = smul.addr %s292, 8
          %s294 = scalar_lea.vmem %s0, %s293
        $region52: #{inverted_residual_forward.1} parent=47 // pred_fallthru
          _
      $region48: #{inverted_residual_forward.1} parent=5 // pred_fallthru
        _
      %p295 = scmp.le.s32.totalorder 1, %s16
      %p296 = scmp.lt.s32.totalorder %s16, 3
      %p297 = pnand %p295, %p296
      %p298 = pneg %p297
      // Predicated region
      $region53: #{inverted_residual_forward.1} parent=5 // pred_check
        _
      $region54: #{inverted_residual_forward.1} parent=5 // pred_check_branch
        %300 = sbr.rel (%p297) target = $region56
      $region55: #{inverted_residual_forward.1} parent=5 // pred_region
        %s301 = ssub.s32 %s16, 1
        // Predicated region
        $region57: #{inverted_residual_forward.1} parent=55 // pred_check
          %p302 = pneg %p210
        $region58: #{inverted_residual_forward.1} parent=55 // pred_check_branch
          %304 = sbr.rel (%p302) target = $region60
        $region59: #{inverted_residual_forward.1} parent=55 // pred_region
          %305 = dma.done [#allocation3], 16
        $region60: #{inverted_residual_forward.1} parent=55 // pred_fallthru
          _
        %306 = sfence
        %p307 = scmp.lt.s32.totalorder %s21, 1
        %s308 = scalar_select %p307, %s21, 1
        %s309 = smul.addr %s308, 4
        %s310 = smul.addr %s309, 8
        %s311 = scalar_lea.vmem %s0, %s310
        %p312 = pneg %p42
        %p313 = pneg %p39
        %p314 = pneg %p63
        %p315 = pneg %p60
        %p316 = pneg %p84
        %p317 = pneg %p81
        %p318 = pneg %p105
        %p319 = pneg %p102
        %p320 = pneg %p126
        %p321 = pneg %p123
        %p322 = pneg %p147
        %p323 = pneg %p144
        %p324 = pneg %p168
        %p325 = pneg %p165
        %p326 = pneg %p189
        %p327 = pneg %p186
        %p328 = pneg %p210
        %p329 = pneg %p207
        %p330 = pneg %p236
        %p331 = pneg %p233
        %p332 = scmp.lt.s32.totalorder %s21, 1
        %s333 = scalar_select %p332, %s21, 1
        %s334 = smul.addr %s333, 4
        %s335 = smul.addr %s334, 8
        %s336 = scalar_lea.vmem %s9, %s335
        %p337 = scmp.lt.s32.totalorder %s21, 1
        %s338 = scalar_select %p337, %s21, 1
        %s339 = smul.addr %s338, 4
        %s340 = smul.addr %s339, 8
        %s341 = scalar_lea.vmem %s0, %s340
        %p342 = scmp.lt.s32.totalorder %s21, 1
        %s343 = scalar_select %p342, %s21, 1
        %s344 = smul.addr %s343, 4
        %s345 = smul.addr %s344, 8
        %s346 = scalar_lea.vmem %s9, %s345
        %v348 = vld [vmem:[%s1] sm:$0xf]
        %v349 = vld [vmem:[%s1 + $0x4] sm:$0xf]
        %v350 = vld [vmem:[%s1 + $0x8] sm:$0xf]
        %v351 = vld [vmem:[%s1 + $0xc] sm:$0xf]
        %v352 = vld [vmem:[%s5] sm:$0xf]
        %v353 = vld [vmem:[%s5 + $0x4] sm:$0xf]
        %v354 = vld [vmem:[%s2] sm:$0xff]
        %v355 = vld [vmem:[%s2 + $0x8] sm:$0xff]
        %v356 = vld [vmem:[%s2 + $0x10] sm:$0xff]
        %v357 = vld [vmem:[%s2 + $0x18] sm:$0xff]
        %v358 = vld [vmem:[%s4] sm:$0xff]
        %v359 = vld [vmem:[%s4 + $0x8] sm:$0xff]
        %v360 = vld [vmem:[%s4 + $0x10] sm:$0xff]
        %v361 = vld [vmem:[%s4 + $0x18] sm:$0xff]
        %v362 = vld [vmem:[%s6] sm:$0xff]
        %v363 = vld [vmem:[%s6 + $0x8] sm:$0xff]
        %v364 = vld [vmem:[%s3] sm:$0xff]
        %v365 = vld [vmem:[%s3 + $0x8] sm:$0xff]
        %v366 = vld [vmem:[%s3 + $0x10] sm:$0xff]
        %v367 = vld [vmem:[%s3 + $0x18] sm:$0xff]
        %v368 = vlaneseq
        %v369 = vand.u32 %v368, 127
        %v370 = vadd.s32 %v369, 128
        %v371 = vcvt.s32.f32 %v369
        %v372 = vcvt.s32.f32 %v370
        %v373 = vrcp.pop 16.0
        %v374 = vmul.f32 %v371, %v373
        %v375 = vmul.f32 %v372, %v373
        %v376 = vfloor.f32 %v374
        %v377 = vfloor.f32 %v375
        %v378 = vmul.f32 %v376, 16.0
        %v379 = vmul.f32 %v377, 16.0
        %v380 = vsub.f32 %v371, %v378
        %v381 = vsub.f32 %v372, %v379
        %v382 = vlaneseq
        %v383 = vshrl.u32 %v382, 7
        %v384 = vcvt.s32.f32 %v383
        %v385 = vrcp.pop 2.0
        %v386 = vmul.f32 %v371, %v385
        %v387 = vfloor.f32 %v386
        %vm388 = vcmp.eq.f32.partialorder %v387, %v384
        %v389 = vsel %vm388, 1, 0
        %v390 = vcvt.s32.f32 %v389
        %v391 = vadd.s32 %v383, 8
        %v392 = vcvt.s32.f32 %v391
        %v393 = vmul.f32 %v384, %v385
        %v394 = vmul.f32 %v392, %v385
        %v395 = vfloor.f32 %v393
        %v396 = vfloor.f32 %v394
        %vm397 = vcmp.eq.f32.partialorder %v395, %v371
        %vm398 = vcmp.eq.f32.partialorder %v396, %v371
        %v399 = vsel %vm397, 1, 0
        %v400 = vsel %vm398, 1, 0
        %v401 = vcvt.s32.f32 %v399
        %v402 = vcvt.s32.f32 %v400
        %s403 = sld [smem:[#allocation2]]
        %s404 = sld [smem:[#allocation2 + $0x1]]
        %s405 = sld [smem:[#allocation2 + $0x2]]
        %s406 = sld [smem:[#allocation2 + $0x3]]
        %v407 = vld [vmem:[%s7] sm:$0xff]
        %v408 = vld [vmem:[%s341] sm:$0xff]
        %v409 = vld [vmem:[%s341 + $0x8] sm:$0xff]
        %v410 = vld [vmem:[%s341 + $0x10] sm:$0xff]
        %v411 = vld [vmem:[%s341 + $0x18] sm:$0xff]
        %v412 = vpack.c.bf16 %v410, %v408
        %v413 = vpack.c.bf16 %v411, %v409
        %415 = vset.pattern.permute.xlu0 0
        %416 = vperm.xlu0 %415, %v354
        %v417 = vpop.permute.xlu0 %416
        %420 = vset.pattern.permute.xlu0 0
        %421 = vperm.xlu0 %420, %v355
        %v422 = vpop.permute.xlu0 %421
        %425 = vset.pattern.permute.xlu0 0
        %426 = vperm.xlu0 %425, %v356
        %v427 = vpop.permute.xlu0 %426
        %430 = vset.pattern.permute.xlu0 0
        %431 = vperm.xlu0 %430, %v357
        %v432 = vpop.permute.xlu0 %431
        %v438 = vunpack.c.l.b16 %v348
        %v439 = vunpack.c.l.b16 %v349
        %v440 = vunpack.c.l.b16 %v350
        %v441 = vunpack.c.l.b16 %v351
        %v442 = vpack.c.b16 %v439, %v438
        %v443 = vpack.c.b16 %v441, %v440
        %vm444 = vcmask 130048
        %v446 = vsel %vm444, %v442, 0
        %v449 = vsel %vm444, %v443, 0
        %451 = vmatprep.subr.bf16.mxu0 0
        %452 = vmatpush1.bf16.msra.mxu0 0
        %453 = vmatprep.subr.bf16.mxu0 0
        %454 = vmatpush1.bf16.msra.mxu0 0
        %455 = vmatprep.subr.bf16.mxu0 0
        %456 = vmatpush1.bf16.msra.mxu0 0
        %457 = vmatprep.subr.bf16.mxu0 0
        %458 = vmatpush1.bf16.msra.mxu0 0
        %459 = vmatprep.subr.bf16.mxu0 0
        %460 = vmatpush1.bf16.msra.mxu0 0
        %461 = vmatprep.subr.bf16.mxu0 0
        %462 = vmatpush1.bf16.msra.mxu0 0
        %463 = vmatprep.subr.bf16.mxu0 0
        %464 = vmatpush1.bf16.msra.mxu0 0
        %465 = vmatprep.subr.bf16.mxu0 %v413
        %466 = vmatpush1.bf16.msra.mxu0 %v412
        %467 = vmatprep.subr.bf16.mxu0 0
        %468 = vmatpush2.bf16.msra.mxu0 0
        %469 = vmatprep.subr.bf16.mxu0 0
        %470 = vmatpush2.bf16.msra.mxu0 0
        %471 = vmatprep.subr.bf16.mxu0 0
        %472 = vmatpush2.bf16.msra.mxu0 0
        %473 = vmatprep.subr.bf16.mxu0 0
        %474 = vmatpush2.bf16.msra.mxu0 0
        %475 = vmatprep.subr.bf16.mxu0 0
        %476 = vmatpush2.bf16.msra.mxu0 0
        %477 = vmatprep.subr.bf16.mxu0 0
        %478 = vmatpush2.bf16.msra.mxu0 0
        %479 = vmatprep.subr.bf16.mxu0 0
        %480 = vmatpush2.bf16.msra.mxu0 0
        %481 = vmatprep.subr.bf16.mxu0 0
        %482 = vmatpush2.bf16.msra.mxu0 0
        %483 = vmatprep.mubr.bf16.mxu0 0
        %484 = vmatmul.mubr.bf16.gmra.mxu0 %v446
        %v485 = vpop.f32.mrf.mxu0
        %v486 = vadd.f32 %v417, %v485
        %v487 = vpop.f32.mrf.mxu0
        %v488 = vadd.f32 %v417, %v487
        %v489 = vpop.f32.mrf.mxu0
        %v490 = vadd.f32 %v422, %v489
        %v491 = vpop.f32.mrf.mxu0
        %v492 = vadd.f32 %v422, %v491
        %493 = vmatprep.mubr.bf16.mxu0 0
        %494 = vmatmul.mubr.bf16.gmra.mxu0 %v449
        %v495 = vpop.f32.mrf.mxu0
        %v496 = vadd.f32 %v427, %v495
        %v497 = vpop.f32.mrf.mxu0
        %v498 = vadd.f32 %v427, %v497
        %v499 = vpop.f32.mrf.mxu0
        %v500 = vadd.f32 %v432, %v499
        %v501 = vpop.f32.mrf.mxu0
        %v502 = vadd.f32 %v432, %v501
        %503 = vdwg.mxu0
        %v504 = vmax.f32 %v486, 0.0
        %v505 = vmax.f32 %v488, 0.0
        %v506 = vmax.f32 %v490, 0.0
        %v507 = vmax.f32 %v492, 0.0
        %v508 = vmax.f32 %v496, 0.0
        %v509 = vmax.f32 %v498, 0.0
        %v510 = vmax.f32 %v500, 0.0
        %v511 = vmax.f32 %v502, 0.0
        %vm512 = vcmp.ge.f32.partialorder %v376, 1.0
        %vm513 = vcmp.ge.f32.partialorder %v377, 1.0
        %vm514 = vcmp.le.f32.partialorder %v376, 16.0
        %vm515 = vcmp.le.f32.partialorder %v377, 16.0
        %vm516 = vmand %vm512, %vm514
        %vm517 = vmand %vm513, %vm515
        %vm518 = vcmp.ge.f32.partialorder %v380, 1.0
        %vm519 = vcmp.ge.f32.partialorder %v381, 1.0
        %vm520 = vmand %vm516, %vm518
        %vm521 = vmand %vm517, %vm519
        %vm522 = vcmp.le.f32.partialorder %v380, 16.0
        %vm523 = vcmp.le.f32.partialorder %v381, 16.0
        %vm524 = vmand %vm520, %vm522
        %vm525 = vmand %vm521, %vm523
        %v526 = vsel %vm524, 1, 0
        %v527 = vsel %vm525, 1, 0
        %v528 = vcvt.s32.f32 %v526
        %v529 = vcvt.s32.f32 %v527
        %530 = vrot.lane.b32.xlu0 %v504, 17
        %v531 = vpop.permute.xlu0 %530
        %532 = vrot.lane.b32.xlu0 %v506, 17
        %v533 = vpop.permute.xlu0 %532
        %534 = vrot.lane.b32.xlu0 %v508, 17
        %v535 = vpop.permute.xlu0 %534
        %536 = vrot.lane.b32.xlu0 %v510, 17
        %v537 = vpop.permute.xlu0 %536
        %538 = vrot.lane.b32.xlu0 %v505, 17
        %v539 = vpop.permute.xlu0 %538
        %540 = vrot.lane.b32.xlu0 %v507, 17
        %v541 = vpop.permute.xlu0 %540
        %542 = vrot.lane.b32.xlu0 %v509, 17
        %v543 = vpop.permute.xlu0 %542
        %544 = vrot.lane.b32.xlu0 %v511, 17
        %v545 = vpop.permute.xlu0 %544
        %vm546 = vcmp.lt.s32.totalorder %v369, 17
        %v547 = vsel %vm546, %v531, %v539
        %v548 = vsel %vm546, %v533, %v541
        %v549 = vsel %vm546, %v535, %v543
        %v550 = vsel %vm546, %v537, %v545
        %v551 = vsel %vm546, %v539, %v531
        %v552 = vsel %vm546, %v541, %v533
        %v553 = vsel %vm546, %v543, %v535
        %v554 = vsel %vm546, %v545, %v537
        %v555 = vmul.f32 %v551, %v528
        %v556 = vmul.f32 %v547, %v529
        %v557 = vmul.f32 %v552, %v528
        %v558 = vmul.f32 %v548, %v529
        %v559 = vmul.f32 %v553, %v528
        %v560 = vmul.f32 %v549, %v529
        %v561 = vmul.f32 %v554, %v528
        %v562 = vmul.f32 %v550, %v529
        %564 = vset.pattern.permute.xlu0 0
        %565 = vperm.xlu0 %564, %v364
        %v566 = vpop.permute.xlu0 %565
        %569 = vset.pattern.permute.xlu0 0
        %570 = vperm.xlu0 %569, %v365
        %v571 = vpop.permute.xlu0 %570
        %574 = vset.pattern.permute.xlu0 0
        %575 = vperm.xlu0 %574, %v366
        %v576 = vpop.permute.xlu0 %575
        %579 = vset.pattern.permute.xlu0 0
        %580 = vperm.xlu0 %579, %v367
        %v581 = vpop.permute.xlu0 %580
        %v583 = vmul.f32 %v555, %v566
        %v584 = vmul.f32 %v556, %v566
        %v585 = vmul.f32 %v557, %v571
        %v586 = vmul.f32 %v558, %v571
        %v587 = vmul.f32 %v559, %v576
        %v588 = vmul.f32 %v560, %v576
        %v589 = vmul.f32 %v561, %v581
        %v590 = vmul.f32 %v562, %v581
        %v591 = vadd.f32 %v583, 0.0
        %v592 = vadd.f32 %v584, 0.0
        %v593 = vadd.f32 %v585, 0.0
        %v594 = vadd.f32 %v586, 0.0
        %v595 = vadd.f32 %v587, 0.0
        %v596 = vadd.f32 %v588, 0.0
        %v597 = vadd.f32 %v589, 0.0
        %v598 = vadd.f32 %v590, 0.0
        %vm599 = vcmp.ge.f32.partialorder %v380, 0.0
        %vm600 = vcmp.ge.f32.partialorder %v381, 0.0
        %vm601 = vmand %vm516, %vm599
        %vm602 = vmand %vm517, %vm600
        %vm603 = vcmp.le.f32.partialorder %v380, 15.0
        %vm604 = vcmp.le.f32.partialorder %v381, 15.0
        %vm605 = vmand %vm601, %vm603
        %vm606 = vmand %vm602, %vm604
        %v607 = vsel %vm605, 1, 0
        %v608 = vsel %vm606, 1, 0
        %v609 = vcvt.s32.f32 %v607
        %v610 = vcvt.s32.f32 %v608
        %611 = vrot.lane.b32.xlu0 %v504, 16
        %v612 = vpop.permute.xlu0 %611
        %613 = vrot.lane.b32.xlu0 %v506, 16
        %v614 = vpop.permute.xlu0 %613
        %615 = vrot.lane.b32.xlu0 %v508, 16
        %v616 = vpop.permute.xlu0 %615
        %617 = vrot.lane.b32.xlu0 %v510, 16
        %v618 = vpop.permute.xlu0 %617
        %619 = vrot.lane.b32.xlu0 %v505, 16
        %v620 = vpop.permute.xlu0 %619
        %621 = vrot.lane.b32.xlu0 %v507, 16
        %v622 = vpop.permute.xlu0 %621
        %623 = vrot.lane.b32.xlu0 %v509, 16
        %v624 = vpop.permute.xlu0 %623
        %625 = vrot.lane.b32.xlu0 %v511, 16
        %v626 = vpop.permute.xlu0 %625
        %vm627 = vcmp.lt.s32.totalorder %v369, 16
        %v628 = vsel %vm627, %v612, %v620
        %v629 = vsel %vm627, %v614, %v622
        %v630 = vsel %vm627, %v616, %v624
        %v631 = vsel %vm627, %v618, %v626
        %v632 = vsel %vm627, %v620, %v612
        %v633 = vsel %vm627, %v622, %v614
        %v634 = vsel %vm627, %v624, %v616
        %v635 = vsel %vm627, %v626, %v618
        %v636 = vmul.f32 %v632, %v609
        %v637 = vmul.f32 %v628, %v610
        %v638 = vmul.f32 %v633, %v609
        %v639 = vmul.f32 %v629, %v610
        %v640 = vmul.f32 %v634, %v609
        %v641 = vmul.f32 %v630, %v610
        %v642 = vmul.f32 %v635, %v609
        %v643 = vmul.f32 %v631, %v610
        %644 = vset.pattern.permute.xlu0 1
        %645 = vperm.xlu0 %644, %v364
        %v646 = vpop.permute.xlu0 %645
        %648 = vset.pattern.permute.xlu0 1
        %649 = vperm.xlu0 %648, %v365
        %v650 = vpop.permute.xlu0 %649
        %652 = vset.pattern.permute.xlu0 1
        %653 = vperm.xlu0 %652, %v366
        %v654 = vpop.permute.xlu0 %653
        %656 = vset.pattern.permute.xlu0 1
        %657 = vperm.xlu0 %656, %v367
        %v658 = vpop.permute.xlu0 %657
        %v660 = vmul.f32 %v636, %v646
        %v661 = vmul.f32 %v637, %v646
        %v662 = vmul.f32 %v638, %v650
        %v663 = vmul.f32 %v639, %v650
        %v664 = vmul.f32 %v640, %v654
        %v665 = vmul.f32 %v641, %v654
        %v666 = vmul.f32 %v642, %v658
        %v667 = vmul.f32 %v643, %v658
        %v668 = vadd.f32 %v591, %v660
        %v669 = vadd.f32 %v592, %v661
        %v670 = vadd.f32 %v593, %v662
        %v671 = vadd.f32 %v594, %v663
        %v672 = vadd.f32 %v595, %v664
        %v673 = vadd.f32 %v596, %v665
        %v674 = vadd.f32 %v597, %v666
        %v675 = vadd.f32 %v598, %v667
        %vm676 = vcmp.ge.f32.partialorder %v380, -1.0
        %vm677 = vcmp.ge.f32.partialorder %v381, -1.0
        %vm678 = vmand %vm516, %vm676
        %vm679 = vmand %vm517, %vm677
        %vm680 = vcmp.le.f32.partialorder %v380, 14.0
        %vm681 = vcmp.le.f32.partialorder %v381, 14.0
        %vm682 = vmand %vm678, %vm680
        %vm683 = vmand %vm679, %vm681
        %v684 = vsel %vm682, 1, 0
        %v685 = vsel %vm683, 1, 0
        %v686 = vcvt.s32.f32 %v684
        %v687 = vcvt.s32.f32 %v685
        %688 = vrot.lane.b32.xlu0 %v504, 15
        %v689 = vpop.permute.xlu0 %688
        %690 = vrot.lane.b32.xlu0 %v506, 15
        %v691 = vpop.permute.xlu0 %690
        %692 = vrot.lane.b32.xlu0 %v508, 15
        %v693 = vpop.permute.xlu0 %692
        %694 = vrot.lane.b32.xlu0 %v510, 15
        %v695 = vpop.permute.xlu0 %694
        %696 = vrot.lane.b32.xlu0 %v505, 15
        %v697 = vpop.permute.xlu0 %696
        %698 = vrot.lane.b32.xlu0 %v507, 15
        %v699 = vpop.permute.xlu0 %698
        %700 = vrot.lane.b32.xlu0 %v509, 15
        %v701 = vpop.permute.xlu0 %700
        %702 = vrot.lane.b32.xlu0 %v511, 15
        %v703 = vpop.permute.xlu0 %702
        %vm704 = vcmp.lt.s32.totalorder %v369, 15
        %v705 = vsel %vm704, %v689, %v697
        %v706 = vsel %vm704, %v691, %v699
        %v707 = vsel %vm704, %v693, %v701
        %v708 = vsel %vm704, %v695, %v703
        %v709 = vsel %vm704, %v697, %v689
        %v710 = vsel %vm704, %v699, %v691
        %v711 = vsel %vm704, %v701, %v693
        %v712 = vsel %vm704, %v703, %v695
        %v713 = vmul.f32 %v709, %v686
        %v714 = vmul.f32 %v705, %v687
        %v715 = vmul.f32 %v710, %v686
        %v716 = vmul.f32 %v706, %v687
        %v717 = vmul.f32 %v711, %v686
        %v718 = vmul.f32 %v707, %v687
        %v719 = vmul.f32 %v712, %v686
        %v720 = vmul.f32 %v708, %v687
        %721 = vset.pattern.permute.xlu0 2
        %722 = vperm.xlu0 %721, %v364
        %v723 = vpop.permute.xlu0 %722
        %725 = vset.pattern.permute.xlu0 2
        %726 = vperm.xlu0 %725, %v365
        %v727 = vpop.permute.xlu0 %726
        %729 = vset.pattern.permute.xlu0 2
        %730 = vperm.xlu0 %729, %v366
        %v731 = vpop.permute.xlu0 %730
        %733 = vset.pattern.permute.xlu0 2
        %734 = vperm.xlu0 %733, %v367
        %v735 = vpop.permute.xlu0 %734
        %v737 = vmul.f32 %v713, %v723
        %v738 = vmul.f32 %v714, %v723
        %v739 = vmul.f32 %v715, %v727
        %v740 = vmul.f32 %v716, %v727
        %v741 = vmul.f32 %v717, %v731
        %v742 = vmul.f32 %v718, %v731
        %v743 = vmul.f32 %v719, %v735
        %v744 = vmul.f32 %v720, %v735
        %v745 = vadd.f32 %v668, %v737
        %v746 = vadd.f32 %v669, %v738
        %v747 = vadd.f32 %v670, %v739
        %v748 = vadd.f32 %v671, %v740
        %v749 = vadd.f32 %v672, %v741
        %v750 = vadd.f32 %v673, %v742
        %v751 = vadd.f32 %v674, %v743
        %v752 = vadd.f32 %v675, %v744
        %vm753 = vcmp.ge.f32.partialorder %v376, 0.0
        %vm754 = vcmp.ge.f32.partialorder %v377, 0.0
        %vm755 = vcmp.le.f32.partialorder %v376, 15.0
        %vm756 = vcmp.le.f32.partialorder %v377, 15.0
        %vm757 = vmand %vm753, %vm755
        %vm758 = vmand %vm754, %vm756
        %vm759 = vmand %vm757, %vm518
        %vm760 = vmand %vm758, %vm519
        %vm761 = vmand %vm759, %vm522
        %vm762 = vmand %vm760, %vm523
        %v763 = vsel %vm761, 1, 0
        %v764 = vsel %vm762, 1, 0
        %v765 = vcvt.s32.f32 %v763
        %v766 = vcvt.s32.f32 %v764
        %767 = vrot.lane.b32.xlu0 %v504, 1
        %v768 = vpop.permute.xlu0 %767
        %769 = vrot.lane.b32.xlu0 %v506, 1
        %v770 = vpop.permute.xlu0 %769
        %771 = vrot.lane.b32.xlu0 %v508, 1
        %v772 = vpop.permute.xlu0 %771
        %773 = vrot.lane.b32.xlu0 %v510, 1
        %v774 = vpop.permute.xlu0 %773
        %775 = vrot.lane.b32.xlu0 %v505, 1
        %v776 = vpop.permute.xlu0 %775
        %777 = vrot.lane.b32.xlu0 %v507, 1
        %v778 = vpop.permute.xlu0 %777
        %779 = vrot.lane.b32.xlu0 %v509, 1
        %v780 = vpop.permute.xlu0 %779
        %781 = vrot.lane.b32.xlu0 %v511, 1
        %v782 = vpop.permute.xlu0 %781
        %vm783 = vcmp.lt.s32.totalorder %v369, 1
        %v784 = vsel %vm783, %v768, %v776
        %v785 = vsel %vm783, %v770, %v778
        %v786 = vsel %vm783, %v772, %v780
        %v787 = vsel %vm783, %v774, %v782
        %v788 = vsel %vm783, %v776, %v768
        %v789 = vsel %vm783, %v778, %v770
        %v790 = vsel %vm783, %v780, %v772
        %v791 = vsel %vm783, %v782, %v774
        %v792 = vmul.f32 %v788, %v765
        %v793 = vmul.f32 %v784, %v766
        %v794 = vmul.f32 %v789, %v765
        %v795 = vmul.f32 %v785, %v766
        %v796 = vmul.f32 %v790, %v765
        %v797 = vmul.f32 %v786, %v766
        %v798 = vmul.f32 %v791, %v765
        %v799 = vmul.f32 %v787, %v766
        %800 = vset.pattern.permute.xlu0 3
        %801 = vperm.xlu0 %800, %v364
        %v802 = vpop.permute.xlu0 %801
        %804 = vset.pattern.permute.xlu0 3
        %805 = vperm.xlu0 %804, %v365
        %v806 = vpop.permute.xlu0 %805
        %808 = vset.pattern.permute.xlu0 3
        %809 = vperm.xlu0 %808, %v366
        %v810 = vpop.permute.xlu0 %809
        %812 = vset.pattern.permute.xlu0 3
        %813 = vperm.xlu0 %812, %v367
        %v814 = vpop.permute.xlu0 %813
        %v816 = vmul.f32 %v792, %v802
        %v817 = vmul.f32 %v793, %v802
        %v818 = vmul.f32 %v794, %v806
        %v819 = vmul.f32 %v795, %v806
        %v820 = vmul.f32 %v796, %v810
        %v821 = vmul.f32 %v797, %v810
        %v822 = vmul.f32 %v798, %v814
        %v823 = vmul.f32 %v799, %v814
        %v824 = vadd.f32 %v745, %v816
        %v825 = vadd.f32 %v746, %v817
        %v826 = vadd.f32 %v747, %v818
        %v827 = vadd.f32 %v748, %v819
        %v828 = vadd.f32 %v749, %v820
        %v829 = vadd.f32 %v750, %v821
        %v830 = vadd.f32 %v751, %v822
        %v831 = vadd.f32 %v752, %v823
        %vm832 = vmand %vm757, %vm599
        %vm833 = vmand %vm758, %vm600
        %vm834 = vmand %vm832, %vm603
        %vm835 = vmand %vm833, %vm604
        %v836 = vsel %vm834, 1, 0
        %v837 = vsel %vm835, 1, 0
        %v838 = vcvt.s32.f32 %v836
        %v839 = vcvt.s32.f32 %v837
        %v840 = vmul.f32 %v504, %v838
        %v841 = vmul.f32 %v505, %v839
        %v842 = vmul.f32 %v506, %v838
        %v843 = vmul.f32 %v507, %v839
        %v844 = vmul.f32 %v508, %v838
        %v845 = vmul.f32 %v509, %v839
        %v846 = vmul.f32 %v510, %v838
        %v847 = vmul.f32 %v511, %v839
        %848 = vset.pattern.permute.xlu0 4
        %849 = vperm.xlu0 %848, %v364
        %v850 = vpop.permute.xlu0 %849
        %852 = vset.pattern.permute.xlu0 4
        %853 = vperm.xlu0 %852, %v365
        %v854 = vpop.permute.xlu0 %853
        %856 = vset.pattern.permute.xlu0 4
        %857 = vperm.xlu0 %856, %v366
        %v858 = vpop.permute.xlu0 %857
        %860 = vset.pattern.permute.xlu0 4
        %861 = vperm.xlu0 %860, %v367
        %v862 = vpop.permute.xlu0 %861
        %v864 = vmul.f32 %v840, %v850
        %v865 = vmul.f32 %v841, %v850
        %v866 = vmul.f32 %v842, %v854
        %v867 = vmul.f32 %v843, %v854
        %v868 = vmul.f32 %v844, %v858
        %v869 = vmul.f32 %v845, %v858
        %v870 = vmul.f32 %v846, %v862
        %v871 = vmul.f32 %v847, %v862
        %v872 = vadd.f32 %v824, %v864
        %v873 = vadd.f32 %v825, %v865
        %v874 = vadd.f32 %v826, %v866
        %v875 = vadd.f32 %v827, %v867
        %v876 = vadd.f32 %v828, %v868
        %v877 = vadd.f32 %v829, %v869
        %v878 = vadd.f32 %v830, %v870
        %v879 = vadd.f32 %v831, %v871
        %vm880 = vmand %vm757, %vm676
        %vm881 = vmand %vm758, %vm677
        %vm882 = vmand %vm880, %vm680
        %vm883 = vmand %vm881, %vm681
        %v884 = vsel %vm882, 1, 0
        %v885 = vsel %vm883, 1, 0
        %v886 = vcvt.s32.f32 %v884
        %v887 = vcvt.s32.f32 %v885
        %888 = vrot.lane.b32.xlu0 %v504, 127
        %v889 = vpop.permute.xlu0 %888
        %890 = vrot.lane.b32.xlu0 %v506, 127
        %v891 = vpop.permute.xlu0 %890
        %892 = vrot.lane.b32.xlu0 %v508, 127
        %v893 = vpop.permute.xlu0 %892
        %894 = vrot.lane.b32.xlu0 %v510, 127
        %v895 = vpop.permute.xlu0 %894
        %896 = vrot.lane.b32.xlu0 %v505, 127
        %v897 = vpop.permute.xlu0 %896
        %898 = vrot.lane.b32.xlu0 %v507, 127
        %v899 = vpop.permute.xlu0 %898
        %900 = vrot.lane.b32.xlu0 %v509, 127
        %v901 = vpop.permute.xlu0 %900
        %902 = vrot.lane.b32.xlu0 %v511, 127
        %v903 = vpop.permute.xlu0 %902
        %vm904 = vcmp.lt.s32.totalorder %v369, 127
        %v905 = vsel %vm904, %v889, %v897
        %v906 = vsel %vm904, %v891, %v899
        %v907 = vsel %vm904, %v893, %v901
        %v908 = vsel %vm904, %v895, %v903
        %v909 = vsel %vm904, %v897, %v889
        %v910 = vsel %vm904, %v899, %v891
        %v911 = vsel %vm904, %v901, %v893
        %v912 = vsel %vm904, %v903, %v895
        %v913 = vmul.f32 %v905, %v886
        %v914 = vmul.f32 %v909, %v887
        %v915 = vmul.f32 %v906, %v886
        %v916 = vmul.f32 %v910, %v887
        %v917 = vmul.f32 %v907, %v886
        %v918 = vmul.f32 %v911, %v887
        %v919 = vmul.f32 %v908, %v886
        %v920 = vmul.f32 %v912, %v887
        %921 = vset.pattern.permute.xlu0 5
        %922 = vperm.xlu0 %921, %v364
        %v923 = vpop.permute.xlu0 %922
        %925 = vset.pattern.permute.xlu0 5
        %926 = vperm.xlu0 %925, %v365
        %v927 = vpop.permute.xlu0 %926
        %929 = vset.pattern.permute.xlu0 5
        %930 = vperm.xlu0 %929, %v366
        %v931 = vpop.permute.xlu0 %930
        %933 = vset.pattern.permute.xlu0 5
        %934 = vperm.xlu0 %933, %v367
        %v935 = vpop.permute.xlu0 %934
        %v937 = vmul.f32 %v913, %v923
        %v938 = vmul.f32 %v914, %v923
        %v939 = vmul.f32 %v915, %v927
        %v940 = vmul.f32 %v916, %v927
        %v941 = vmul.f32 %v917, %v931
        %v942 = vmul.f32 %v918, %v931
        %v943 = vmul.f32 %v919, %v935
        %v944 = vmul.f32 %v920, %v935
        %v945 = vadd.f32 %v872, %v937
        %v946 = vadd.f32 %v873, %v938
        %v947 = vadd.f32 %v874, %v939
        %v948 = vadd.f32 %v875, %v940
        %v949 = vadd.f32 %v876, %v941
        %v950 = vadd.f32 %v877, %v942
        %v951 = vadd.f32 %v878, %v943
        %v952 = vadd.f32 %v879, %v944
        %vm953 = vcmp.ge.f32.partialorder %v376, -1.0
        %vm954 = vcmp.ge.f32.partialorder %v377, -1.0
        %vm955 = vcmp.le.f32.partialorder %v376, 14.0
        %vm956 = vcmp.le.f32.partialorder %v377, 14.0
        %vm957 = vmand %vm953, %vm955
        %vm958 = vmand %vm954, %vm956
        %vm959 = vmand %vm957, %vm518
        %vm960 = vmand %vm958, %vm519
        %vm961 = vmand %vm959, %vm522
        %vm962 = vmand %vm960, %vm523
        %v963 = vsel %vm961, 1, 0
        %v964 = vsel %vm962, 1, 0
        %v965 = vcvt.s32.f32 %v963
        %v966 = vcvt.s32.f32 %v964
        %967 = vrot.lane.b32.xlu0 %v504, 113
        %v968 = vpop.permute.xlu0 %967
        %969 = vrot.lane.b32.xlu0 %v506, 113
        %v970 = vpop.permute.xlu0 %969
        %971 = vrot.lane.b32.xlu0 %v508, 113
        %v972 = vpop.permute.xlu0 %971
        %973 = vrot.lane.b32.xlu0 %v510, 113
        %v974 = vpop.permute.xlu0 %973
        %975 = vrot.lane.b32.xlu0 %v505, 113
        %v976 = vpop.permute.xlu0 %975
        %977 = vrot.lane.b32.xlu0 %v507, 113
        %v978 = vpop.permute.xlu0 %977
        %979 = vrot.lane.b32.xlu0 %v509, 113
        %v980 = vpop.permute.xlu0 %979
        %981 = vrot.lane.b32.xlu0 %v511, 113
        %v982 = vpop.permute.xlu0 %981
        %vm983 = vcmp.lt.s32.totalorder %v369, 113
        %v984 = vsel %vm983, %v968, %v976
        %v985 = vsel %vm983, %v970, %v978
        %v986 = vsel %vm983, %v972, %v980
        %v987 = vsel %vm983, %v974, %v982
        %v988 = vsel %vm983, %v976, %v968
        %v989 = vsel %vm983, %v978, %v970
        %v990 = vsel %vm983, %v980, %v972
        %v991 = vsel %vm983, %v982, %v974
        %v992 = vmul.f32 %v984, %v965
        %v993 = vmul.f32 %v988, %v966
        %v994 = vmul.f32 %v985, %v965
        %v995 = vmul.f32 %v989, %v966
        %v996 = vmul.f32 %v986, %v965
        %v997 = vmul.f32 %v990, %v966
        %v998 = vmul.f32 %v987, %v965
        %v999 = vmul.f32 %v991, %v966
        %1000 = vset.pattern.permute.xlu0 6
        %1001 = vperm.xlu0 %1000, %v364
        %v1002 = vpop.permute.xlu0 %1001
        %1004 = vset.pattern.permute.xlu0 6
        %1005 = vperm.xlu0 %1004, %v365
        %v1006 = vpop.permute.xlu0 %1005
        %1008 = vset.pattern.permute.xlu0 6
        %1009 = vperm.xlu0 %1008, %v366
        %v1010 = vpop.permute.xlu0 %1009
        %1012 = vset.pattern.permute.xlu0 6
        %1013 = vperm.xlu0 %1012, %v367
        %v1014 = vpop.permute.xlu0 %1013
        %v1016 = vmul.f32 %v992, %v1002
        %v1017 = vmul.f32 %v993, %v1002
        %v1018 = vmul.f32 %v994, %v1006
        %v1019 = vmul.f32 %v995, %v1006
        %v1020 = vmul.f32 %v996, %v1010
        %v1021 = vmul.f32 %v997, %v1010
        %v1022 = vmul.f32 %v998, %v1014
        %v1023 = vmul.f32 %v999, %v1014
        %v1024 = vadd.f32 %v945, %v1016
        %v1025 = vadd.f32 %v946, %v1017
        %v1026 = vadd.f32 %v947, %v1018
        %v1027 = vadd.f32 %v948, %v1019
        %v1028 = vadd.f32 %v949, %v1020
        %v1029 = vadd.f32 %v950, %v1021
        %v1030 = vadd.f32 %v951, %v1022
        %v1031 = vadd.f32 %v952, %v1023
        %vm1032 = vmand %vm957, %vm599
        %vm1033 = vmand %vm958, %vm600
        %vm1034 = vmand %vm1032, %vm603
        %vm1035 = vmand %vm1033, %vm604
        %v1036 = vsel %vm1034, 1, 0
        %v1037 = vsel %vm1035, 1, 0
        %v1038 = vcvt.s32.f32 %v1036
        %v1039 = vcvt.s32.f32 %v1037
        %1040 = vrot.lane.b32.xlu0 %v504, 112
        %v1041 = vpop.permute.xlu0 %1040
        %1042 = vrot.lane.b32.xlu0 %v506, 112
        %v1043 = vpop.permute.xlu0 %1042
        %1044 = vrot.lane.b32.xlu0 %v508, 112
        %v1045 = vpop.permute.xlu0 %1044
        %1046 = vrot.lane.b32.xlu0 %v510, 112
        %v1047 = vpop.permute.xlu0 %1046
        %1048 = vrot.lane.b32.xlu0 %v505, 112
        %v1049 = vpop.permute.xlu0 %1048
        %1050 = vrot.lane.b32.xlu0 %v507, 112
        %v1051 = vpop.permute.xlu0 %1050
        %1052 = vrot.lane.b32.xlu0 %v509, 112
        %v1053 = vpop.permute.xlu0 %1052
        %1054 = vrot.lane.b32.xlu0 %v511, 112
        %v1055 = vpop.permute.xlu0 %1054
        %vm1056 = vcmp.lt.s32.totalorder %v369, 112
        %v1057 = vsel %vm1056, %v1041, %v1049
        %v1058 = vsel %vm1056, %v1043, %v1051
        %v1059 = vsel %vm1056, %v1045, %v1053
        %v1060 = vsel %vm1056, %v1047, %v1055
        %v1061 = vsel %vm1056, %v1049, %v1041
        %v1062 = vsel %vm1056, %v1051, %v1043
        %v1063 = vsel %vm1056, %v1053, %v1045
        %v1064 = vsel %vm1056, %v1055, %v1047
        %v1065 = vmul.f32 %v1057, %v1038
        %v1066 = vmul.f32 %v1061, %v1039
        %v1067 = vmul.f32 %v1058, %v1038
        %v1068 = vmul.f32 %v1062, %v1039
        %v1069 = vmul.f32 %v1059, %v1038
        %v1070 = vmul.f32 %v1063, %v1039
        %v1071 = vmul.f32 %v1060, %v1038
        %v1072 = vmul.f32 %v1064, %v1039
        %1073 = vset.pattern.permute.xlu0 7
        %1074 = vperm.xlu0 %1073, %v364
        %v1075 = vpop.permute.xlu0 %1074
        %1077 = vset.pattern.permute.xlu0 7
        %1078 = vperm.xlu0 %1077, %v365
        %v1079 = vpop.permute.xlu0 %1078
        %1081 = vset.pattern.permute.xlu0 7
        %1082 = vperm.xlu0 %1081, %v366
        %v1083 = vpop.permute.xlu0 %1082
        %1085 = vset.pattern.permute.xlu0 7
        %1086 = vperm.xlu0 %1085, %v367
        %v1087 = vpop.permute.xlu0 %1086
        %v1089 = vmul.f32 %v1065, %v1075
        %v1090 = vmul.f32 %v1066, %v1075
        %v1091 = vmul.f32 %v1067, %v1079
        %v1092 = vmul.f32 %v1068, %v1079
        %v1093 = vmul.f32 %v1069, %v1083
        %v1094 = vmul.f32 %v1070, %v1083
        %v1095 = vmul.f32 %v1071, %v1087
        %v1096 = vmul.f32 %v1072, %v1087
        %v1097 = vadd.f32 %v1024, %v1089
        %v1098 = vadd.f32 %v1025, %v1090
        %v1099 = vadd.f32 %v1026, %v1091
        %v1100 = vadd.f32 %v1027, %v1092
        %v1101 = vadd.f32 %v1028, %v1093
        %v1102 = vadd.f32 %v1029, %v1094
        %v1103 = vadd.f32 %v1030, %v1095
        %v1104 = vadd.f32 %v1031, %v1096
        %vm1105 = vmand %vm957, %vm676
        %vm1106 = vmand %vm958, %vm677
        %vm1107 = vmand %vm1105, %vm680
        %vm1108 = vmand %vm1106, %vm681
        %v1109 = vsel %vm1107, 1, 0
        %v1110 = vsel %vm1108, 1, 0
        %v1111 = vcvt.s32.f32 %v1109
        %v1112 = vcvt.s32.f32 %v1110
        %1113 = vrot.lane.b32.xlu0 %v504, 111
        %v1114 = vpop.permute.xlu0 %1113
        %1115 = vrot.lane.b32.xlu0 %v506, 111
        %v1116 = vpop.permute.xlu0 %1115
        %1117 = vrot.lane.b32.xlu0 %v508, 111
        %v1118 = vpop.permute.xlu0 %1117
        %1119 = vrot.lane.b32.xlu0 %v510, 111
        %v1120 = vpop.permute.xlu0 %1119
        %1121 = vrot.lane.b32.xlu0 %v505, 111
        %v1122 = vpop.permute.xlu0 %1121
        %1123 = vrot.lane.b32.xlu0 %v507, 111
        %v1124 = vpop.permute.xlu0 %1123
        %1125 = vrot.lane.b32.xlu0 %v509, 111
        %v1126 = vpop.permute.xlu0 %1125
        %1127 = vrot.lane.b32.xlu0 %v511, 111
        %v1128 = vpop.permute.xlu0 %1127
        %vm1129 = vcmp.lt.s32.totalorder %v369, 111
        %v1130 = vsel %vm1129, %v1114, %v1122
        %v1131 = vsel %vm1129, %v1116, %v1124
        %v1132 = vsel %vm1129, %v1118, %v1126
        %v1133 = vsel %vm1129, %v1120, %v1128
        %v1134 = vsel %vm1129, %v1122, %v1114
        %v1135 = vsel %vm1129, %v1124, %v1116
        %v1136 = vsel %vm1129, %v1126, %v1118
        %v1137 = vsel %vm1129, %v1128, %v1120
        %v1138 = vmul.f32 %v1130, %v1111
        %v1139 = vmul.f32 %v1134, %v1112
        %v1140 = vmul.f32 %v1131, %v1111
        %v1141 = vmul.f32 %v1135, %v1112
        %v1142 = vmul.f32 %v1132, %v1111
        %v1143 = vmul.f32 %v1136, %v1112
        %v1144 = vmul.f32 %v1133, %v1111
        %v1145 = vmul.f32 %v1137, %v1112
        %1146 = vset.pattern.permute.xlu0 8
        %1147 = vperm.xlu0 %1146, %v364
        %v1148 = vpop.permute.xlu0 %1147
        %1150 = vset.pattern.permute.xlu0 8
        %1151 = vperm.xlu0 %1150, %v365
        %v1152 = vpop.permute.xlu0 %1151
        %1154 = vset.pattern.permute.xlu0 8
        %1155 = vperm.xlu0 %1154, %v366
        %v1156 = vpop.permute.xlu0 %1155
        %1158 = vset.pattern.permute.xlu0 8
        %1159 = vperm.xlu0 %1158, %v367
        %v1160 = vpop.permute.xlu0 %1159
        %v1162 = vmul.f32 %v1138, %v1148
        %v1163 = vmul.f32 %v1139, %v1148
        %v1164 = vmul.f32 %v1140, %v1152
        %v1165 = vmul.f32 %v1141, %v1152
        %v1166 = vmul.f32 %v1142, %v1156
        %v1167 = vmul.f32 %v1143, %v1156
        %v1168 = vmul.f32 %v1144, %v1160
        %v1169 = vmul.f32 %v1145, %v1160
        %v1170 = vadd.f32 %v1097, %v1162
        %v1171 = vadd.f32 %v1098, %v1163
        %v1172 = vadd.f32 %v1099, %v1164
        %v1173 = vadd.f32 %v1100, %v1165
        %v1174 = vadd.f32 %v1101, %v1166
        %v1175 = vadd.f32 %v1102, %v1167
        %v1176 = vadd.f32 %v1103, %v1168
        %v1177 = vadd.f32 %v1104, %v1169
        %1179 = vset.pattern.permute.xlu0 0
        %1180 = vperm.xlu0 %1179, %v358
        %v1181 = vpop.permute.xlu0 %1180
        %1184 = vset.pattern.permute.xlu0 0
        %1185 = vperm.xlu0 %1184, %v359
        %v1186 = vpop.permute.xlu0 %1185
        %1189 = vset.pattern.permute.xlu0 0
        %1190 = vperm.xlu0 %1189, %v360
        %v1191 = vpop.permute.xlu0 %1190
        %1194 = vset.pattern.permute.xlu0 0
        %1195 = vperm.xlu0 %1194, %v361
        %v1196 = vpop.permute.xlu0 %1195
        %v1198 = vadd.f32 %v1170, %v1181
        %v1199 = vadd.f32 %v1171, %v1181
        %v1200 = vadd.f32 %v1172, %v1186
        %v1201 = vadd.f32 %v1173, %v1186
        %v1202 = vadd.f32 %v1174, %v1191
        %v1203 = vadd.f32 %v1175, %v1191
        %v1204 = vadd.f32 %v1176, %v1196
        %v1205 = vadd.f32 %v1177, %v1196
        %v1206 = vmax.f32 %v1198, 0.0
        %v1207 = vmax.f32 %v1199, 0.0
        %v1208 = vmax.f32 %v1200, 0.0
        %v1209 = vmax.f32 %v1201, 0.0
        %v1210 = vmax.f32 %v1202, 0.0
        %v1211 = vmax.f32 %v1203, 0.0
        %v1212 = vmax.f32 %v1204, 0.0
        %v1213 = vmax.f32 %v1205, 0.0
        %v1214 = vpack.c.bf16 %v1208, %v1206
        %v1215 = vpack.c.bf16 %v1209, %v1207
        %v1216 = vpack.c.bf16 %v1212, %v1210
        %v1217 = vpack.c.bf16 %v1213, %v1211
        %1219 = vset.pattern.permute.xlu0 0
        %1220 = vperm.xlu0 %1219, %v362
        %v1221 = vpop.permute.xlu0 %1220
        %1224 = vset.pattern.permute.xlu0 0
        %1225 = vperm.xlu0 %1224, %v363
        %v1226 = vpop.permute.xlu0 %1225
        %v1230 = vunpack.c.l.b16 %v352
        %v1231 = vunpack.c.l.b16 %v353
        %v1232 = vpack.c.b16 %v1231, %v1230
        %vm1233 = vcmask 261120
        %v1235 = vsel %vm1233, %v1232, 0
        %1237 = vmatprep.subr.bf16.mxu0 0
        %1238 = vmatpush1.bf16.msra.mxu0 0
        %1239 = vmatprep.subr.bf16.mxu0 0
        %1240 = vmatpush1.bf16.msra.mxu0 0
        %1241 = vmatprep.subr.bf16.mxu0 0
        %1242 = vmatpush1.bf16.msra.mxu0 0
        %1243 = vmatprep.subr.bf16.mxu0 0
        %1244 = vmatpush1.bf16.msra.mxu0 0
        %1245 = vmatprep.subr.bf16.mxu0 0
        %1246 = vmatpush1.bf16.msra.mxu0 0
        %1247 = vmatprep.subr.bf16.mxu0 0
        %1248 = vmatpush1.bf16.msra.mxu0 0
        %1249 = vmatprep.subr.bf16.mxu0 %v1217
        %1250 = vmatpush1.bf16.msra.mxu0 %v1216
        %1251 = vmatprep.subr.bf16.mxu0 %v1215
        %1252 = vmatpush1.bf16.msra.mxu0 %v1214
        %1253 = vmatprep.subr.bf16.mxu0 0
        %1254 = vmatpush2.bf16.msra.mxu0 0
        %1255 = vmatprep.subr.bf16.mxu0 0
        %1256 = vmatpush2.bf16.msra.mxu0 0
        %1257 = vmatprep.subr.bf16.mxu0 0
        %1258 = vmatpush2.bf16.msra.mxu0 0
        %1259 = vmatprep.subr.bf16.mxu0 0
        %1260 = vmatpush2.bf16.msra.mxu0 0
        %1261 = vmatprep.subr.bf16.mxu0 0
        %1262 = vmatpush2.bf16.msra.mxu0 0
        %1263 = vmatprep.subr.bf16.mxu0 0
        %1264 = vmatpush2.bf16.msra.mxu0 0
        %1265 = vmatprep.subr.bf16.mxu0 0
        %1266 = vmatpush2.bf16.msra.mxu0 0
        %1267 = vmatprep.subr.bf16.mxu0 0
        %1268 = vmatpush2.bf16.msra.mxu0 0
        %1269 = vmatprep.mubr.bf16.mxu0 0
        %1270 = vmatmul.mubr.bf16.gmra.mxu0 %v1235
        %v1271 = vpop.f32.mrf.mxu0
        %v1272 = vadd.f32 %v1221, %v1271
        %v1273 = vpop.f32.mrf.mxu0
        %v1274 = vadd.f32 %v1221, %v1273
        %v1275 = vpop.f32.mrf.mxu0
        %v1276 = vadd.f32 %v1226, %v1275
        %v1277 = vpop.f32.mrf.mxu0
        %v1278 = vadd.f32 %v1226, %v1277
        %1279 = vdwg.mxu0
        %v1281 = vsel %vm444, %v390, 0
        %1283 = vmatprep.subr.mxu0 0.0
        %1284 = vmatpush1.msra.mxu0 0.0
        %1285 = vmatprep.subr.mxu0 0.0
        %1286 = vmatpush1.msra.mxu0 0.0
        %1287 = vmatprep.subr.mxu0 0.0
        %1288 = vmatpush1.msra.mxu0 0.0
        %1289 = vmatprep.subr.mxu0 0.0
        %1290 = vmatpush1.msra.mxu0 0.0
        %1291 = vmatprep.subr.mxu0 0.0
        %1292 = vmatpush1.msra.mxu0 0.0
        %1293 = vmatprep.subr.mxu0 0.0
        %1294 = vmatpush1.msra.mxu0 0.0
        %1295 = vmatprep.subr.mxu0 0.0
        %1296 = vmatpush1.msra.mxu0 0.0
        %1297 = vmatprep.subr.mxu0 0.0
        %1298 = vmatpush1.msra.mxu0 0.0
        %1299 = vmatprep.subr.mxu0 0.0
        %1300 = vmatpush1.msra.mxu0 0.0
        %1301 = vmatprep.subr.mxu0 0.0
        %1302 = vmatpush1.msra.mxu0 0.0
        %1303 = vmatprep.subr.mxu0 0.0
        %1304 = vmatpush1.msra.mxu0 0.0
        %1305 = vmatprep.subr.mxu0 0.0
        %1306 = vmatpush1.msra.mxu0 0.0
        %1307 = vmatprep.subr.mxu0 0.0
        %1308 = vmatpush1.msra.mxu0 0.0
        %1309 = vmatprep.subr.mxu0 0.0
        %1310 = vmatpush1.msra.mxu0 0.0
        %1311 = vmatprep.subr.mxu0 %v1278
        %1312 = vmatpush1.msra.mxu0 %v1276
        %1313 = vmatprep.subr.mxu0 %v1274
        %1314 = vmatpush1.msra.mxu0 %v1272
        %1315 = vmatprep.subr.mxu0 0.0
        %1316 = vmatpush2.msra.mxu0 0.0
        %1317 = vmatprep.subr.mxu0 0.0
        %1318 = vmatpush2.msra.mxu0 0.0
        %1319 = vmatprep.subr.mxu0 0.0
        %1320 = vmatpush2.msra.mxu0 0.0
        %1321 = vmatprep.subr.mxu0 0.0
        %1322 = vmatpush2.msra.mxu0 0.0
        %1323 = vmatprep.subr.mxu0 0.0
        %1324 = vmatpush2.msra.mxu0 0.0
        %1325 = vmatprep.subr.mxu0 0.0
        %1326 = vmatpush2.msra.mxu0 0.0
        %1327 = vmatprep.subr.mxu0 0.0
        %1328 = vmatpush2.msra.mxu0 0.0
        %1329 = vmatprep.subr.mxu0 0.0
        %1330 = vmatpush2.msra.mxu0 0.0
        %1331 = vmatprep.subr.mxu0 0.0
        %1332 = vmatpush2.msra.mxu0 0.0
        %1333 = vmatprep.subr.mxu0 0.0
        %1334 = vmatpush2.msra.mxu0 0.0
        %1335 = vmatprep.subr.mxu0 0.0
        %1336 = vmatpush2.msra.mxu0 0.0
        %1337 = vmatprep.subr.mxu0 0.0
        %1338 = vmatpush2.msra.mxu0 0.0
        %1339 = vmatprep.subr.mxu0 0.0
        %1340 = vmatpush2.msra.mxu0 0.0
        %1341 = vmatprep.subr.mxu0 0.0
        %1342 = vmatpush2.msra.mxu0 0.0
        %1343 = vmatprep.subr.mxu0 0.0
        %1344 = vmatpush2.msra.mxu0 0.0
        %1345 = vmatprep.subr.mxu0 0.0
        %1346 = vmatpush2.msra.mxu0 0.0
        %1347 = vmatprep.mubr.f32.mxu0 0.0
        %1348 = vmatmul.mubr.f32.gmra.mxu0 %v1281
        %v1349 = vpop.f32.mrf.mxu0
        %v1350 = vadd.f32 0.0, %v1349
        %v1351 = vpop.f32.mrf.mxu0
        %v1352 = vadd.f32 0.0, %v1351
        %1353 = vdwg.mxu0
        %v1354 = vmax.f32 %v1350, %v1352
        %1355 = vmax.xlane.f32.xlu0 %v1354
        %v1356 = vpop.xlane.xlu0 %1355
        %vm1357 = vcmp.eq.f32.partialorder %v1350, %v1356
        %vm1358 = vcmp.eq.f32.partialorder %v1352, %v1356
        %v1359 = vsel %vm1357, %v369, 256
        %v1360 = vsel %vm1358, %v370, 256
        %vm1361 = vcmp.lt.s32.totalorder %v1359, %v1360
        %v1362 = vsel %vm1361, %v1359, %v1360
        %v1363 = vand.u32 %v1362, 65535
        %v1364 = vshra.s32 %v1362, 16
        %v1365 = vcvt.s32.f32 %v1363
        %v1366 = vcvt.s32.f32 %v1364
        %1367 = vmin.xlane.f32.xlu0 %v1366
        %v1368 = vpop.xlane.xlu0 %1367
        %vm1369 = vcmp.eq.f32.partialorder %v1366, %v1368
        %v1370 = vsel %vm1369, %v1365, inf
        %1371 = vmin.xlane.f32.xlu0 %v1370
        %v1372 = vpop.xlane.xlu0 %1371
        %v1373 = vcvt.f32.s32 %v1372
        %v1374 = vcvt.f32.s32 %v1368
        %v1375 = vshll.u32 %v1374, 16
        %v1376 = vadd.s32 %v1375, %v1373
        %vm1377 = vcmp.eq.s32.totalorder %v369, %v1376
        %vm1378 = vcmp.eq.s32.totalorder %v370, %v1376
        %v1379 = vsel %vm1377, 1, 0
        %v1380 = vsel %vm1378, 1, 0
        %v1381 = vcvt.s32.f32 %v1379
        %v1382 = vcvt.s32.f32 %v1380
        %vm1383 = vcmask 64512
        %v1385 = vsel %vm1383, %v401, 0
        %v1388 = vsel %vm1383, %v402, 0
        %1390 = vmatprep.subr.mxu0 0.0
        %1391 = vmatpush1.msra.mxu0 0.0
        %1392 = vmatprep.subr.mxu0 0.0
        %1393 = vmatpush1.msra.mxu0 0.0
        %1394 = vmatprep.subr.mxu0 0.0
        %1395 = vmatpush1.msra.mxu0 0.0
        %1396 = vmatprep.subr.mxu0 0.0
        %1397 = vmatpush1.msra.mxu0 0.0
        %1398 = vmatprep.subr.mxu0 0.0
        %1399 = vmatpush1.msra.mxu0 0.0
        %1400 = vmatprep.subr.mxu0 0.0
        %1401 = vmatpush1.msra.mxu0 0.0
        %1402 = vmatprep.subr.mxu0 0.0
        %1403 = vmatpush1.msra.mxu0 0.0
        %1404 = vmatprep.subr.mxu0 0.0
        %1405 = vmatpush1.msra.mxu0 0.0
        %1406 = vmatprep.subr.mxu0 0.0
        %1407 = vmatpush1.msra.mxu0 0.0
        %1408 = vmatprep.subr.mxu0 0.0
        %1409 = vmatpush1.msra.mxu0 0.0
        %1410 = vmatprep.subr.mxu0 0.0
        %1411 = vmatpush1.msra.mxu0 0.0
        %1412 = vmatprep.subr.mxu0 0.0
        %1413 = vmatpush1.msra.mxu0 0.0
        %1414 = vmatprep.subr.mxu0 0.0
        %1415 = vmatpush1.msra.mxu0 0.0
        %1416 = vmatprep.subr.mxu0 0.0
        %1417 = vmatpush1.msra.mxu0 0.0
        %1418 = vmatprep.subr.mxu0 0.0
        %1419 = vmatpush1.msra.mxu0 0.0
        %1420 = vmatprep.subr.mxu0 %v1382
        %1421 = vmatpush1.msra.mxu0 %v1381
        %1422 = vmatprep.subr.mxu0 0.0
        %1423 = vmatpush2.msra.mxu0 0.0
        %1424 = vmatprep.subr.mxu0 0.0
        %1425 = vmatpush2.msra.mxu0 0.0
        %1426 = vmatprep.subr.mxu0 0.0
        %1427 = vmatpush2.msra.mxu0 0.0
        %1428 = vmatprep.subr.mxu0 0.0
        %1429 = vmatpush2.msra.mxu0 0.0
        %1430 = vmatprep.subr.mxu0 0.0
        %1431 = vmatpush2.msra.mxu0 0.0
        %1432 = vmatprep.subr.mxu0 0.0
        %1433 = vmatpush2.msra.mxu0 0.0
        %1434 = vmatprep.subr.mxu0 0.0
        %1435 = vmatpush2.msra.mxu0 0.0
        %1436 = vmatprep.subr.mxu0 0.0
        %1437 = vmatpush2.msra.mxu0 0.0
        %1438 = vmatprep.subr.mxu0 0.0
        %1439 = vmatpush2.msra.mxu0 0.0
        %1440 = vmatprep.subr.mxu0 0.0
        %1441 = vmatpush2.msra.mxu0 0.0
        %1442 = vmatprep.subr.mxu0 0.0
        %1443 = vmatpush2.msra.mxu0 0.0
        %1444 = vmatprep.subr.mxu0 0.0
        %1445 = vmatpush2.msra.mxu0 0.0
        %1446 = vmatprep.subr.mxu0 0.0
        %1447 = vmatpush2.msra.mxu0 0.0
        %1448 = vmatprep.subr.mxu0 0.0
        %1449 = vmatpush2.msra.mxu0 0.0
        %1450 = vmatprep.subr.mxu0 0.0
        %1451 = vmatpush2.msra.mxu0 0.0
        %1452 = vmatprep.subr.mxu0 0.0
        %1453 = vmatpush2.msra.mxu0 0.0
        %1454 = vmatprep.mubr.f32.mxu0 0.0
        %1455 = vmatmul.mubr.f32.gmra.mxu0 %v1385
        %v1456 = vpop.f32.mrf.mxu0
        %v1457 = vadd.f32 0.0, %v1456
        %v1458 = vpop.f32.mrf.mxu0
        %v1459 = vadd.f32 0.0, %v1458
        %1460 = vmatprep.mubr.f32.mxu0 0.0
        %1461 = vmatmul.mubr.f32.gmra.mxu0 %v1388
        %v1462 = vpop.f32.mrf.mxu0
        %v1463 = vadd.f32 0.0, %v1462
        %v1464 = vpop.f32.mrf.mxu0
        %v1465 = vadd.f32 0.0, %v1464
        %1466 = vdwg.mxu0
        %v1467 = vmul.f32 %v1272, %v1457
        %v1468 = vmul.f32 %v1274, %v1459
        %v1469 = vmul.f32 %v1276, %v1463
        %v1470 = vmul.f32 %v1278, %v1465
        %v1471 = vadd.f32 %v1467, %v1468
        %1472 = vadd.xlane.f32.xlu0 %v1471
        %v1473 = vpop.xlane.xlu0 %1472
        %v1474 = vadd.f32 %v1469, %v1470
        %1475 = vadd.xlane.f32.xlu0 %v1474
        %v1476 = vpop.xlane.xlu0 %1475
        %v1477 = vadd.f32 %v1272, %v1274
        %1478 = vadd.xlane.f32.xlu0 %v1477
        %v1479 = vpop.xlane.xlu0 %1478
        %v1480 = vadd.f32 %v1276, %v1278
        %1481 = vadd.xlane.f32.xlu0 %v1480
        %v1482 = vpop.xlane.xlu0 %1481
        %v1483 = vrcp.pop 256.0
        %v1484 = vmul.f32 %v1479, %v1483
        %v1485 = vmul.f32 %v1482, %v1483
        %v1486 = vmul.f32 %v1473, %v1272
        %v1487 = vmul.f32 %v1473, %v1274
        %v1488 = vmul.f32 %v1476, %v1276
        %v1489 = vmul.f32 %v1476, %v1278
        %1490 = vmatprep.subr.mxu0 0.0
        %1491 = vmatpush1.msra.mxu0 0.0
        %1492 = vmatprep.subr.mxu0 0.0
        %1493 = vmatpush1.msra.mxu0 0.0
        %1494 = vmatprep.subr.mxu0 0.0
        %1495 = vmatpush1.msra.mxu0 0.0
        %1496 = vmatprep.subr.mxu0 0.0
        %1497 = vmatpush1.msra.mxu0 0.0
        %1498 = vmatprep.subr.mxu0 0.0
        %1499 = vmatpush1.msra.mxu0 0.0
        %1500 = vmatprep.subr.mxu0 0.0
        %1501 = vmatpush1.msra.mxu0 0.0
        %1502 = vmatprep.subr.mxu0 0.0
        %1503 = vmatpush1.msra.mxu0 0.0
        %1504 = vmatprep.subr.mxu0 0.0
        %1505 = vmatpush1.msra.mxu0 0.0
        %1506 = vmatprep.subr.mxu0 0.0
        %1507 = vmatpush1.msra.mxu0 0.0
        %1508 = vmatprep.subr.mxu0 0.0
        %1509 = vmatpush1.msra.mxu0 0.0
        %1510 = vmatprep.subr.mxu0 0.0
        %1511 = vmatpush1.msra.mxu0 0.0
        %1512 = vmatprep.subr.mxu0 0.0
        %1513 = vmatpush1.msra.mxu0 0.0
        %1514 = vmatprep.subr.mxu0 0.0
        %1515 = vmatpush1.msra.mxu0 0.0
        %1516 = vmatprep.subr.mxu0 0.0
        %1517 = vmatpush1.msra.mxu0 0.0
        %1518 = vmatprep.subr.mxu0 %v1489
        %1519 = vmatpush1.msra.mxu0 %v1488
        %1520 = vmatprep.subr.mxu0 %v1487
        %1521 = vmatpush1.msra.mxu0 %v1486
        %1522 = vmatprep.subr.mxu0 0.0
        %1523 = vmatpush2.msra.mxu0 0.0
        %1524 = vmatprep.subr.mxu0 0.0
        %1525 = vmatpush2.msra.mxu0 0.0
        %1526 = vmatprep.subr.mxu0 0.0
        %1527 = vmatpush2.msra.mxu0 0.0
        %1528 = vmatprep.subr.mxu0 0.0
        %1529 = vmatpush2.msra.mxu0 0.0
        %1530 = vmatprep.subr.mxu0 0.0
        %1531 = vmatpush2.msra.mxu0 0.0
        %1532 = vmatprep.subr.mxu0 0.0
        %1533 = vmatpush2.msra.mxu0 0.0
        %1534 = vmatprep.subr.mxu0 0.0
        %1535 = vmatpush2.msra.mxu0 0.0
        %1536 = vmatprep.subr.mxu0 0.0
        %1537 = vmatpush2.msra.mxu0 0.0
        %1538 = vmatprep.subr.mxu0 0.0
        %1539 = vmatpush2.msra.mxu0 0.0
        %1540 = vmatprep.subr.mxu0 0.0
        %1541 = vmatpush2.msra.mxu0 0.0
        %1542 = vmatprep.subr.mxu0 0.0
        %1543 = vmatpush2.msra.mxu0 0.0
        %1544 = vmatprep.subr.mxu0 0.0
        %1545 = vmatpush2.msra.mxu0 0.0
        %1546 = vmatprep.subr.mxu0 0.0
        %1547 = vmatpush2.msra.mxu0 0.0
        %1548 = vmatprep.subr.mxu0 0.0
        %1549 = vmatpush2.msra.mxu0 0.0
        %1550 = vmatprep.subr.mxu0 0.0
        %1551 = vmatpush2.msra.mxu0 0.0
        %1552 = vmatprep.subr.mxu0 0.0
        %1553 = vmatpush2.msra.mxu0 0.0
        %1554 = vmatprep.mubr.f32.mxu0 0.0
        %1555 = vmatmul.mubr.f32.gmra.mxu0 %v1281
        %v1556 = vpop.f32.mrf.mxu0
        %v1557 = vadd.f32 0.0, %v1556
        %v1558 = vpop.f32.mrf.mxu0
        %v1559 = vadd.f32 0.0, %v1558
        %1560 = vdwg.mxu0
        %v1561 = vmul.f32 %v1484, %v1272
        %v1562 = vmul.f32 %v1484, %v1274
        %v1563 = vmul.f32 %v1485, %v1276
        %v1564 = vmul.f32 %v1485, %v1278
        %1565 = vmatprep.subr.mxu0 0.0
        %1566 = vmatpush1.msra.mxu0 0.0
        %1567 = vmatprep.subr.mxu0 0.0
        %1568 = vmatpush1.msra.mxu0 0.0
        %1569 = vmatprep.subr.mxu0 0.0
        %1570 = vmatpush1.msra.mxu0 0.0
        %1571 = vmatprep.subr.mxu0 0.0
        %1572 = vmatpush1.msra.mxu0 0.0
        %1573 = vmatprep.subr.mxu0 0.0
        %1574 = vmatpush1.msra.mxu0 0.0
        %1575 = vmatprep.subr.mxu0 0.0
        %1576 = vmatpush1.msra.mxu0 0.0
        %1577 = vmatprep.subr.mxu0 0.0
        %1578 = vmatpush1.msra.mxu0 0.0
        %1579 = vmatprep.subr.mxu0 0.0
        %1580 = vmatpush1.msra.mxu0 0.0
        %1581 = vmatprep.subr.mxu0 0.0
        %1582 = vmatpush1.msra.mxu0 0.0
        %1583 = vmatprep.subr.mxu0 0.0
        %1584 = vmatpush1.msra.mxu0 0.0
        %1585 = vmatprep.subr.mxu0 0.0
        %1586 = vmatpush1.msra.mxu0 0.0
        %1587 = vmatprep.subr.mxu0 0.0
        %1588 = vmatpush1.msra.mxu0 0.0
        %1589 = vmatprep.subr.mxu0 0.0
        %1590 = vmatpush1.msra.mxu0 0.0
        %1591 = vmatprep.subr.mxu0 0.0
        %1592 = vmatpush1.msra.mxu0 0.0
        %1593 = vmatprep.subr.mxu0 %v1564
        %1594 = vmatpush1.msra.mxu0 %v1563
        %1595 = vmatprep.subr.mxu0 %v1562
        %1596 = vmatpush1.msra.mxu0 %v1561
        %1597 = vmatprep.subr.mxu0 0.0
        %1598 = vmatpush2.msra.mxu0 0.0
        %1599 = vmatprep.subr.mxu0 0.0
        %1600 = vmatpush2.msra.mxu0 0.0
        %1601 = vmatprep.subr.mxu0 0.0
        %1602 = vmatpush2.msra.mxu0 0.0
        %1603 = vmatprep.subr.mxu0 0.0
        %1604 = vmatpush2.msra.mxu0 0.0
        %1605 = vmatprep.subr.mxu0 0.0
        %1606 = vmatpush2.msra.mxu0 0.0
        %1607 = vmatprep.subr.mxu0 0.0
        %1608 = vmatpush2.msra.mxu0 0.0
        %1609 = vmatprep.subr.mxu0 0.0
        %1610 = vmatpush2.msra.mxu0 0.0
        %1611 = vmatprep.subr.mxu0 0.0
        %1612 = vmatpush2.msra.mxu0 0.0
        %1613 = vmatprep.subr.mxu0 0.0
        %1614 = vmatpush2.msra.mxu0 0.0
        %1615 = vmatprep.subr.mxu0 0.0
        %1616 = vmatpush2.msra.mxu0 0.0
        %1617 = vmatprep.subr.mxu0 0.0
        %1618 = vmatpush2.msra.mxu0 0.0
        %1619 = vmatprep.subr.mxu0 0.0
        %1620 = vmatpush2.msra.mxu0 0.0
        %1621 = vmatprep.subr.mxu0 0.0
        %1622 = vmatpush2.msra.mxu0 0.0
        %1623 = vmatprep.subr.mxu0 0.0
        %1624 = vmatpush2.msra.mxu0 0.0
        %1625 = vmatprep.subr.mxu0 0.0
        %1626 = vmatpush2.msra.mxu0 0.0
        %1627 = vmatprep.subr.mxu0 0.0
        %1628 = vmatpush2.msra.mxu0 0.0
        %1629 = vmatprep.mubr.f32.mxu0 0.0
        %1630 = vmatmul.mubr.f32.gmra.mxu0 %v1281
        %v1631 = vpop.f32.mrf.mxu0
        %v1632 = vadd.f32 0.0, %v1631
        %v1633 = vpop.f32.mrf.mxu0
        %v1634 = vadd.f32 0.0, %v1633
        %1635 = vdwg.mxu0
        %v1636 = vcvt.s32.f32 %v1376
        %v1637 = vmul.f32 %v1636, %v373
        %v1638 = vfloor.f32 %v1637
        %v1639 = vmul.f32 %v1638, 16.0
        %v1640 = vsub.f32 %v1636, %v1639
        %v1641 = vsub.f32 %v376, %v1638
        %v1642 = vsub.f32 %v377, %v1638
        %v1643 = vand.u32 2147483647, %v1641
        %v1644 = vand.u32 2147483647, %v1642
        %v1645 = vstv %s403
        %v1646 = vmul.f32 %v1643, %v1645
        %v1647 = vmul.f32 %v1644, %v1645
        %v1648 = vsub.f32 %v380, %v1640
        %v1649 = vsub.f32 %v381, %v1640
        %v1650 = vand.u32 2147483647, %v1648
        %v1651 = vand.u32 2147483647, %v1649
        %v1652 = vstv %s404
        %v1653 = vmul.f32 %v1650, %v1652
        %v1654 = vmul.f32 %v1651, %v1652
        %v1655 = vmul.f32 %v1646, %v1646
        %v1656 = vmul.f32 %v1647, %v1647
        %v1657 = vsub.f32 0.0, %v1655
        %v1658 = vsub.f32 0.0, %v1656
        %v1659 = vstv %s406
        %v1660 = vmul.f32 %v1657, %v1659
        %v1661 = vmul.f32 %v1658, %v1659
        %v1662 = vmul.f32 %v1660, 1.442695
        %v1663 = vpow.pop %v1662
        %v1664 = vmul.f32 %v1661, 1.442695
        %v1665 = vpow.pop %v1664
        %v1666 = vstv %s405
        %v1667 = vmul.f32 %v1663, %v1666
        %v1668 = vmul.f32 %v1665, %v1666
        %v1669 = vmul.f32 %v1653, %v1653
        %v1670 = vmul.f32 %v1654, %v1654
        %v1671 = vsub.f32 0.0, %v1669
        %v1672 = vsub.f32 0.0, %v1670
        %v1673 = vmul.f32 %v1671, %v1659
        %v1674 = vmul.f32 %v1672, %v1659
        %v1675 = vmul.f32 %v1673, 1.442695
        %v1676 = vpow.pop %v1675
        %v1677 = vmul.f32 %v1674, 1.442695
        %v1678 = vpow.pop %v1677
        %v1679 = vmul.f32 %v1676, %v1666
        %v1680 = vmul.f32 %v1678, %v1666
        %v1681 = vadd.f32 %v1667, %v1679
        %v1682 = vadd.f32 %v1668, %v1680
        %v1683 = vmul.f32 %v1681, 0.5
        %v1684 = vmul.f32 %v1682, 0.5
        %v1685 = vmul.f32 %v1557, %v1683
        %v1686 = vmul.f32 %v1559, %v1684
        %1688 = vset.pattern.permute.xlu0 0
        %1689 = vperm.xlu0 %1688, %v407
        %v1690 = vpop.permute.xlu0 %1689
        %v1692 = vmul.f32 %v1685, %v1690
        %v1693 = vmul.f32 %v1686, %v1690
        %1694 = vset.pattern.permute.xlu0 1
        %1695 = vperm.xlu0 %1694, %v407
        %v1696 = vpop.permute.xlu0 %1695
        %v1698 = vmul.f32 %v1632, %v1696
        %v1699 = vmul.f32 %v1634, %v1696
        %v1700 = vadd.f32 %v1692, %v1698
        %v1701 = vadd.f32 %v1693, %v1699
        %v1702 = vadd.f32 %v1700, %v1701
        %1703 = vadd.xlane.f32.xlu0 %v1702
        %v1704 = vpop.xlane.xlu0 %1703
        %v1705 = vmul.f32 %v1704, %v1483
        %v1706 = vsub.f32 %v1700, %v1705
        %v1707 = vsub.f32 %v1701, %v1705
        %v1708 = vmul.f32 %v1706, %v1706
        %v1709 = vmul.f32 %v1707, %v1707
        %v1710 = vadd.f32 %v1708, %v1709
        %1711 = vadd.xlane.f32.xlu0 %v1710
        %v1712 = vpop.xlane.xlu0 %1711
        %v1713 = vmul.f32 %v1712, 0.003921569
        %v1714 = vrsqrt.pop %v1713
        %v1715 = vmul.f32 %v1713, %v1714
        %vm1716 = vcmp.eq.f32.partialorder %v1713, inf
        %v1717 = vsel %vm1716, %v1713, %v1715
        %vm1718 = vcmp.eq.f32.partialorder %v1713, 0.0
        %v1719 = vand.u32 %v1713, 2147483648
        %v1720 = vsel %vm1718, %v1719, %v1717
        %v1721 = vadd.f32 %v1720, 1e-05
        %v1722 = vrcp.pop %v1721
        %v1723 = vmul.f32 %v1706, %v1722
        %v1724 = vmul.f32 %v1707, %v1722
        %1725 = vset.pattern.permute.xlu0 2
        %1726 = vperm.xlu0 %1725, %v407
        %v1727 = vpop.permute.xlu0 %1726
        %v1729 = vmul.f32 %v1723, %v1727
        %v1730 = vmul.f32 %v1724, %v1727
        %1731 = vset.pattern.permute.xlu0 3
        %1732 = vperm.xlu0 %1731, %v407
        %v1733 = vpop.permute.xlu0 %1732
        %v1735 = vadd.f32 %v1729, %v1733
        %v1736 = vadd.f32 %v1730, %v1733
        %v1737 = vxor.u32 %v1735, 2147483648
        %v1738 = vxor.u32 %v1736, 2147483648
        %v1739 = vmul.f32 %v1737, 1.442695
        %v1740 = vpow.pop %v1739
        %v1741 = vmul.f32 %v1738, 1.442695
        %v1742 = vpow.pop %v1741
        %v1743 = vadd.f32 %v1740, 1.0
        %v1744 = vadd.f32 %v1742, 1.0
        %v1745 = vrcp.pop %v1743
        %v1746 = vmul.f32 1.0, %v1745
        %v1747 = vrcp.pop %v1744
        %v1748 = vmul.f32 1.0, %v1747
        %1749 = vmatprep.subr.mxu0 0.0
        %1750 = vmatpush1.msra.mxu0 0.0
        %1751 = vmatprep.subr.mxu0 0.0
        %1752 = vmatpush1.msra.mxu0 0.0
        %1753 = vmatprep.subr.mxu0 0.0
        %1754 = vmatpush1.msra.mxu0 0.0
        %1755 = vmatprep.subr.mxu0 0.0
        %1756 = vmatpush1.msra.mxu0 0.0
        %1757 = vmatprep.subr.mxu0 0.0
        %1758 = vmatpush1.msra.mxu0 0.0
        %1759 = vmatprep.subr.mxu0 0.0
        %1760 = vmatpush1.msra.mxu0 0.0
        %1761 = vmatprep.subr.mxu0 0.0
        %1762 = vmatpush1.msra.mxu0 0.0
        %1763 = vmatprep.subr.mxu0 0.0
        %1764 = vmatpush1.msra.mxu0 0.0
        %1765 = vmatprep.subr.mxu0 0.0
        %1766 = vmatpush1.msra.mxu0 0.0
        %1767 = vmatprep.subr.mxu0 0.0
        %1768 = vmatpush1.msra.mxu0 0.0
        %1769 = vmatprep.subr.mxu0 0.0
        %1770 = vmatpush1.msra.mxu0 0.0
        %1771 = vmatprep.subr.mxu0 0.0
        %1772 = vmatpush1.msra.mxu0 0.0
        %1773 = vmatprep.subr.mxu0 0.0
        %1774 = vmatpush1.msra.mxu0 0.0
        %1775 = vmatprep.subr.mxu0 0.0
        %1776 = vmatpush1.msra.mxu0 0.0
        %1777 = vmatprep.subr.mxu0 0.0
        %1778 = vmatpush1.msra.mxu0 0.0
        %1779 = vmatprep.subr.mxu0 %v1748
        %1780 = vmatpush1.msra.mxu0 %v1746
        %1781 = vmatprep.subr.mxu0 0.0
        %1782 = vmatpush2.msra.mxu0 0.0
        %1783 = vmatprep.subr.mxu0 0.0
        %1784 = vmatpush2.msra.mxu0 0.0
        %1785 = vmatprep.subr.mxu0 0.0
        %1786 = vmatpush2.msra.mxu0 0.0
        %1787 = vmatprep.subr.mxu0 0.0
        %1788 = vmatpush2.msra.mxu0 0.0
        %1789 = vmatprep.subr.mxu0 0.0
        %1790 = vmatpush2.msra.mxu0 0.0
        %1791 = vmatprep.subr.mxu0 0.0
        %1792 = vmatpush2.msra.mxu0 0.0
        %1793 = vmatprep.subr.mxu0 0.0
        %1794 = vmatpush2.msra.mxu0 0.0
        %1795 = vmatprep.subr.mxu0 0.0
        %1796 = vmatpush2.msra.mxu0 0.0
        %1797 = vmatprep.subr.mxu0 0.0
        %1798 = vmatpush2.msra.mxu0 0.0
        %1799 = vmatprep.subr.mxu0 0.0
        %1800 = vmatpush2.msra.mxu0 0.0
        %1801 = vmatprep.subr.mxu0 0.0
        %1802 = vmatpush2.msra.mxu0 0.0
        %1803 = vmatprep.subr.mxu0 0.0
        %1804 = vmatpush2.msra.mxu0 0.0
        %1805 = vmatprep.subr.mxu0 0.0
        %1806 = vmatpush2.msra.mxu0 0.0
        %1807 = vmatprep.subr.mxu0 0.0
        %1808 = vmatpush2.msra.mxu0 0.0
        %1809 = vmatprep.subr.mxu0 0.0
        %1810 = vmatpush2.msra.mxu0 0.0
        %1811 = vmatprep.subr.mxu0 0.0
        %1812 = vmatpush2.msra.mxu0 0.0
        %1813 = vmatprep.mubr.f32.mxu0 0.0
        %1814 = vmatmul.mubr.f32.gmra.mxu0 %v1385
        %v1815 = vpop.f32.mrf.mxu0
        %v1816 = vadd.f32 0.0, %v1815
        %v1817 = vpop.f32.mrf.mxu0
        %v1818 = vadd.f32 0.0, %v1817
        %1819 = vmatprep.mubr.f32.mxu0 0.0
        %1820 = vmatmul.mubr.f32.gmra.mxu0 %v1388
        %v1821 = vpop.f32.mrf.mxu0
        %v1822 = vadd.f32 0.0, %v1821
        %v1823 = vpop.f32.mrf.mxu0
        %v1824 = vadd.f32 0.0, %v1823
        %1825 = vdwg.mxu0
        %v1826 = vmul.f32 %v1272, %v1816
        %v1827 = vmul.f32 %v1274, %v1818
        %v1828 = vmul.f32 %v1276, %v1822
        %v1829 = vmul.f32 %v1278, %v1824
        %v1830 = vadd.f32 %v1826, %v408
        %v1831 = vadd.f32 %v1827, %v409
        %v1832 = vadd.f32 %v1828, %v410
        %v1833 = vadd.f32 %v1829, %v411
        %1834 = vst [vmem:[%s346] sm:$0xff] %v1830
        %1835 = vst [vmem:[%s346 + $0x8] sm:$0xff] %v1831
        %1836 = vst [vmem:[%s346 + $0x10] sm:$0xff] %v1832
        %1837 = vst [vmem:[%s346 + $0x18] sm:$0xff] %v1833
        %p1838 = scmp.lt.s32.totalorder %s21, 1
        %s1839 = scalar_select %p1838, %s21, 1
        %s1840 = smul.addr %s1839, 4
        %s1841 = smul.addr %s1840, 8
        %s1842 = scalar_lea.vmem %s9, %s1841
        // Predicated region
        $region61: #{inverted_residual_forward.1} parent=55 // pred_check
          %p1843 = pneg %p233
        $region62: #{inverted_residual_forward.1} parent=55 // pred_check_branch
          %1845 = sbr.rel (%p1843) target = $region64
        $region63: #{inverted_residual_forward.1} parent=55 // pred_region
          _
        $region64: #{inverted_residual_forward.1} parent=55 // pred_fallthru
          _
      $region56: #{inverted_residual_forward.1} parent=5 // pred_fallthru
        _
      %p1846 = scmp.le.s32.totalorder 2, %s16
      // Predicated region
      $region65: #{inverted_residual_forward.1} parent=5 // pred_check
        %p1847 = pneg %p1846
      $region66: #{inverted_residual_forward.1} parent=5 // pred_check_branch
        %1849 = sbr.rel (%p1847) target = $region68
      $region67: #{inverted_residual_forward.1} parent=5 // pred_region
        %s1850 = ssub.s32 %s16, 2
        // Predicated region
        $region69: #{inverted_residual_forward.1} parent=67 // pred_check
          %p1851 = pneg %p239
        $region70: #{inverted_residual_forward.1} parent=67 // pred_check_branch
          %1853 = sbr.rel (%p1851) target = $region72
        $region71: #{inverted_residual_forward.1} parent=67 // pred_region
          %p1854 = scmp.lt.s32.totalorder %s22, 1
          %s1855 = scalar_select %p1854, %s22, 1
          %s1856 = smul.addr %s1855, 4
          %s1857 = smul.addr %s1856, 8
          %s1858 = scalar_lea.vmem %s9, %s1857
        $region72: #{inverted_residual_forward.1} parent=67 // pred_fallthru
          _
      $region68: #{inverted_residual_forward.1} parent=5 // pred_fallthru
        _
    $region6: #{inverted_residual_forward.1} parent=1 // loop_footer
      %s20 = sadd.s32 1, %s16
    $region7: #{inverted_residual_forward.1} parent=1 // loop_footer_branch
      %15 = sbr.rel target = $region3
    $region8: #{inverted_residual_forward.1} parent=1 // loop_exit
      _
    %1859 = vsyncpa [#allocation3], 1
    %s1860 = scalar_lea.sflag [#allocation3], 1
    %1861 = vsyncpa %s1860, 1

</llo_original>
